<compile_context>
chip_gen: v5e
topology: v5e:2x2
jax: 0.10.0
libtpu: 0.0.40
codegen_flags: <defaults>
</compile_context>

<pallas_src>
import math
from functools import partial

import jax
import jax.numpy as jnp
from jax.experimental import pallas as pl
from jax.experimental.pallas import tpu as pltpu

MSG_DIM = 24     # geo(6) + distance(1) + angle(1) + feat(8) + discrete(8)
LANE = 128


def _round_up(x, m):
    return ((x + m - 1) // m) * m


# ----------------------------------------------------------------------------
# Fused Pallas kernel: pruned graph aggregation + all GcnSAGE layers
# ----------------------------------------------------------------------------
def fused_sage_kernel(out_feats_per_layer, *refs):
    """refs = (starts, counts,                    # scalar-prefetch (SMEM)
               dst, msgs, h0, [w1,w2,b,g,bt]*L,   # inputs
               out,                               # output
               ah_acc)                            # VMEM scratch

    Grid axis 0: node row tiles ("parallel").
    Grid axis 1: edge tiles within this row tile's dst band ("arbitrary").
    """
    num_layers = len(out_feats_per_layer)
    starts_ref, counts_ref, dst_ref, m_ref, h0_ref = refs[:5]
    layer_refs = refs[5:5 + 5 * num_layers]
    out_ref = refs[5 + 5 * num_layers]
    ah_acc = refs[6 + 5 * num_layers]
    del starts_ref  # only used by the index_maps

    i = pl.program_id(0)
    e = pl.program_id(1)
    tn = h0_ref.shape[0]

    @pl.when(e == 0)
    def _():
        ah_acc[...] = jnp.zeros_like(ah_acc)

    # Only the first counts[i] edge tiles of this row tile's band carry edges
    # destined here; remaining steps are skipped (their DMA was clamped to the
    # previous block index, so the pipeline does not re-fetch anything).
    @pl.when(e < counts_ref[i])
    def _():
        # One-hot destination mask, built from a (tn,1) sublane iota vs the
        # (1,te) dst row — no (tn,te) int32 iota materialisation.
        row_ids = jax.lax.broadcasted_iota(jnp.int32, (tn, 1), 0) + i * tn
        onehot = jnp.where(row_ids == dst_ref[...],
                           jnp.float32(1.0), jnp.float32(0.0))       # (tn, te)
        ah_acc[...] += jnp.dot(onehot, m_ref[...],
                               preferred_element_type=jnp.float32)   # (tn, 24)

    @pl.when(e == pl.num_programs(1) - 1)
    def _():
        ah = ah_acc[...]                     # already scaled by norm[dst]
        h = h0_ref[...]                      # masked node feats (tn, Fpad)
        for l in range(num_layers):
            w1, w2, b, gamma, beta = layer_refs[5 * l: 5 * l + 5]
            f_true = out_feats_per_layer[l]
            # concat([h, ah]) @ W^T  ==  h @ W1 + ah @ W2  (W split in wrapper)
            z = (jnp.dot(h, w1[...], preferred_element_type=jnp.float32)
                 + jnp.dot(ah, w2[...], preferred_element_type=jnp.float32)
                 + b[...])
            # LayerNorm over the TRUE f_true lanes.  Padded W columns, bias,
            # gamma, beta are exactly 0, hence padded z lanes are exactly 0,
            # so sum(z) and sum(z*z) only see the true lanes and the E[z^2]
            # form needs no lane mask.
            inv_f = 1.0 / float(f_true)
            mean = jnp.sum(z, axis=-1, keepdims=True) * inv_f
            var = jnp.sum(z * z, axis=-1, keepdims=True) * inv_f - mean * mean
            zn = (z - mean) * jax.lax.rsqrt(var + 1e-5)
            zn = zn * gamma[...] + beta[...]      # padded gamma/beta are 0
            h = jnp.maximum(zn, 0.0)              # activation = F.relu
        out_ref[...] = h.astype(out_ref.dtype)


# ----------------------------------------------------------------------------
# Parameter init (matches GcnSAGELayer.reset_parameters / LayerNorm defaults),
# stored pre-split (W = [W1 | W2]) and zero-padded to 128-lane multiples.
# ----------------------------------------------------------------------------
def init_params(key, layers_dimensions):
    params = []
    for i in range(len(layers_dimensions) - 1):
        in_dim = layers_dimensions[i]
        out_feats = layers_dimensions[i + 1]
        in_feats = in_dim + MSG_DIM                 # self.in_feats = in + 24
        stdv = 1.0 / math.sqrt(in_feats)            # 1 / sqrt(weight.size(1))
        key, kw, kb = jax.random.split(key, 3)
        W = jax.random.uniform(kw, (out_feats, in_feats), jnp.float32,
                               -stdv, stdv)
        b = jax.random.uniform(kb, (out_feats,), jnp.float32, -stdv, stdv)
        gamma = jnp.ones((out_feats,), jnp.float32)     # LayerNorm affine
        beta = jnp.zeros((out_feats,), jnp.float32)

        in_pad = _round_up(in_dim, LANE)
        out_pad = _round_up(out_feats, LANE)
        W1t = jnp.transpose(W[:, :in_dim])              # (in_dim, out)
        W2t = jnp.transpose(W[:, in_dim:])              # (24, out)
        # NOTE: padded columns / lanes MUST stay exactly zero (the in-kernel
        # LayerNorm relies on it).
        W1p = jnp.zeros((in_pad, out_pad), jnp.float32).at[:in_dim, :out_feats].set(W1t)
        W2p = jnp.zeros((MSG_DIM, out_pad), jnp.float32).at[:, :out_feats].set(W2t)
        bp = jnp.zeros((1, out_pad), jnp.float32).at[0, :out_feats].set(b)
        gp = jnp.zeros((1, out_pad), jnp.float32).at[0, :out_feats].set(gamma)
        btp = jnp.zeros((1, out_pad), jnp.float32).at[0, :out_feats].set(beta)
        params.append(dict(W1p=W1p, W2p=W2p, bp=bp, gp=gp, btp=btp,
                           in_feats=in_dim, out_feats=out_feats,
                           in_pad=in_pad, out_pad=out_pad))
    enc_mask_token = jnp.zeros((1, layers_dimensions[0]), jnp.float32)
    return params, enc_mask_token


def encoding_mask_noise(key, x, enc_mask_token, mask_rate):
    num_nodes = x.shape[0]
    perm = jax.random.permutation(key, num_nodes)
    num_mask = int(mask_rate * num_nodes)
    mask_nodes = perm[:num_mask]
    out_x = x.at[mask_nodes].set(0.0)
    out_x = out_x.at[mask_nodes].add(enc_mask_token[0])
    return out_x


# ----------------------------------------------------------------------------
# Forward wrapper (edge sort + prefetch table + padding + pallas_call)
# ----------------------------------------------------------------------------
def forward(graph, params, enc_mask_token, mask_rate, mask_key,
            row_tile=256, edge_tile=4096):
    geo = graph["Geometric"].astype(jnp.float32)            # (N, geo_dim)
    src = graph["src"].astype(jnp.int32)
    dst = graph["dst"].astype(jnp.int32)
    dist = graph["distance"].astype(jnp.float32)[:, None]   # Tresh_distance=True
    angle = graph["angle"].astype(jnp.float32)[:, None]
    feat = graph["feat"].astype(jnp.float32)
    disc = graph["discrete_bin_edges"].astype(jnp.float32)
    norm = graph["norm"].astype(jnp.float32)                 # (N, 1)
    N, geo_dim = geo.shape
    E = dst.shape[0]

    # masked node features (enc_mask_token is zeros per nn.Parameter(zeros))
    use_x = encoding_mask_noise(mask_key, geo, enc_mask_token, mask_rate)

    # Edge messages use the ORIGINAL unmasked Geometric data (message_func);
    # pre-scale by norm[dst] (commutes through the per-destination sum).
    msgs = jnp.concatenate([geo[src], dist, angle, feat, disc], axis=1)
    assert msgs.shape[1] == MSG_DIM
    msgs = msgs * norm[dst]

    # Sort edges by destination so each node row tile only touches its band.
    order = jnp.argsort(dst)
    dst_s = dst[order]
    msgs_s = msgs[order]

    f0_pad = params[0]["in_pad"]
    fl_pad = params[-1]["out_pad"]
    fl_true = params[-1]["out_feats"]

    # Row tiles: keep >=2 so the "parallel" axis can feed both v7x TensorCores.
    tn = min(row_tile, _round_up(N, 8))
    if _round_up(N, tn) // tn < 2 and N > 8:
        tn = _round_up((N + 1) // 2, 8)
    n_pad = _round_up(N, tn)
    n_row_tiles = n_pad // tn

    te = min(edge_tile, _round_up(E, LANE))
    e_pad = _round_up(E, te)
    n_edge_tiles = e_pad // te

    # Per-row-tile edge-tile (start, count) table -> scalar prefetch (SMEM).
    boundaries = jnp.arange(n_row_tiles + 1, dtype=jnp.int32) * tn
    bnds = jnp.searchsorted(dst_s, boundaries).astype(jnp.int32)
    edge_start, edge_end = bnds[:-1], bnds[1:]
    tile_start = jnp.minimum(edge_start // te, n_edge_tiles - 1).astype(jnp.int32)
    tile_end = (edge_end + te - 1) // te
    counts = jnp.where(edge_end > edge_start,
                       tile_end - tile_start, 0).astype(jnp.int32)
    # Data-dependent grid extent (one host sync; this wrapper is not jitted).
    max_count = max(int(jax.device_get(jnp.max(counts))), 1)

    h0 = jnp.zeros((n_pad, f0_pad), jnp.float32).at[:N, :geo_dim].set(use_x)
    m_p = jnp.zeros((e_pad, MSG_DIM), jnp.float32).at[:E].set(msgs_s)
    dst_p = jnp.full((1, e_pad), -1, jnp.int32).at[0, :E].set(dst_s)  # pad=-1

    # Clamp to the last useful tile of this row's band: trailing skipped steps
    # keep the same block index, so Pallas skips their DMA entirely.
    def edge_blk(i, e, starts, cnts):
        return starts[i] + jnp.minimum(e, jnp.maximum(cnts[i] - 1, 0))

    in_specs = [
        pl.BlockSpec((1, te), lambda i, e, s, c: (0, edge_blk(i, e, s, c))),
        pl.BlockSpec((te, MSG_DIM), lambda i, e, s, c: (edge_blk(i, e, s, c), 0)),
        pl.BlockSpec((tn, f0_pad), lambda i, e, s, c: (i, 0)),
    ]
    args = [dst_p, m_p, h0]
    for p in params:                                          # tiny, VMEM-resident
        for name in ("W1p", "W2p", "bp", "gp", "btp"):
            w = p[name]
            in_specs.append(pl.BlockSpec(w.shape, lambda i, e, s, c: (0, 0)))
            args.append(w)

    out_feats_per_layer = tuple(p["out_feats"] for p in params)
    kernel = partial(fused_sage_kernel, out_feats_per_layer)

    grid_spec = pltpu.PrefetchScalarGridSpec(
        num_scalar_prefetch=2,
        grid=(n_row_tiles, max_count),
        in_specs=in_specs,
        out_specs=pl.BlockSpec((tn, fl_pad), lambda i, e, s, c: (i, 0)),
        scratch_shapes=[pltpu.VMEM((tn, MSG_DIM), jnp.float32)],
    )

    out = pl.pallas_call(
        kernel,
        out_shape=jax.ShapeDtypeStruct((n_pad, fl_pad), jnp.float32),
        grid_spec=grid_spec,
        compiler_params=pltpu.CompilerParams(
            dimension_semantics=("parallel", "arbitrary"),
            vmem_limit_bytes=48 * 1024 * 1024),   # fits v7x 64 MiB VMEM
    )(tile_start, counts, *args)

    # self.dropout: identity in eval mode
    return out[:N, :fl_true]


# ----------------------------------------------------------------------------
# Pure-JAX reference (same math, no Pallas) for validation
# ----------------------------------------------------------------------------
def reference_forward(graph, params, enc_mask_token, mask_rate, mask_key):
    geo = graph["Geometric"].astype(jnp.float32)
    src, dst = graph["src"], graph["dst"]
    dist = graph["distance"][:, None]
    angle = graph["angle"][:, None]
    feat = graph["feat"]
    disc = graph["discrete_bin_edges"]
    norm = graph["norm"]
    N = geo.shape[0]
    use_x = encoding_mask_noise(mask_key, geo, enc_mask_token, mask_rate)
    msgs = jnp.concatenate([geo[src], dist, angle, feat, disc], axis=1)
    ah = jnp.zeros((N, MSG_DIM), jnp.float32).at[dst].add(msgs) * norm
    h = use_x
    for p in params:
        i_d, o_d = p["in_feats"], p["out_feats"]
        w1 = p["W1p"][:i_d, :o_d]
        w2 = p["W2p"][:, :o_d]
        b = p["bp"][:1, :o_d]
        g = p["gp"][:1, :o_d]
        bt = p["btp"][:1, :o_d]
        z = h @ w1 + ah @ w2 + b
        mean = z.mean(-1, keepdims=True)
        var = ((z - mean) ** 2).mean(-1, keepdims=True)
        zn = (z - mean) / jnp.sqrt(var + 1e-5)
        h = jnp.maximum(zn * g + bt, 0.0)
    return h


# ----------------------------------------------------------------------------
# Main
# ----------------------------------------------------------------------------
if __name__ == "__main__":
    key = jax.random.PRNGKey(0)

    # small synthetic graph sized so both grid axes have > 1 tile
    N, E = 300, 1200
    geo_dim, bin_dim, disc_dim = 6, 8, 8     # 6 + 1 + 1 + 8 + 8 = 24 = MSG_DIM
    layers_dimensions = [geo_dim, 32, 32]
    mask_rate = 0.2

    (k_geo, k_src, k_dst, k_d, k_a, k_f, k_b, k_param, k_mask) = (
        jax.random.split(key, 9))

    src = jax.random.randint(k_src, (E,), 0, N, dtype=jnp.int32)
    dst = jax.random.randint(k_dst, (E,), 0, N, dtype=jnp.int32)
    in_deg = jnp.zeros((N,), jnp.float32).at[dst].add(1.0)
    norm = (1.0 / jnp.maximum(in_deg, 1.0))[:, None]          # g.ndata['norm']

    graph = dict(
        Geometric=jax.random.normal(k_geo, (N, geo_dim), jnp.float32),
        src=src,
        dst=dst,
        distance=jax.random.uniform(k_d, (E,), jnp.float32),
        angle=jax.random.uniform(k_a, (E,), jnp.float32),
        feat=jax.random.normal(k_f, (E, bin_dim), jnp.float32),
        discrete_bin_edges=jax.random.normal(k_b, (E, disc_dim), jnp.float32),
        norm=norm,
    )

    params, enc_mask_token = init_params(k_param, layers_dimensions)

    ref = jax.block_until_ready(
        reference_forward(graph, params, enc_mask_token, mask_rate, k_mask))

    # 1) small tiles on this toy graph -> multi-tile grid, exercises the
    #    dst-band pruning / pl.when gating path
    out_small = jax.block_until_ready(
        forward(graph, params, enc_mask_token, mask_rate, k_mask,
                row_tile=128, edge_tile=512))
    # 2) production-default tiles (row_tile=256, edge_tile=4096)
    out_default = jax.block_until_ready(
        forward(graph, params, enc_mask_token, mask_rate, k_mask))

    for out in (out_small, out_default):
        assert out.shape == (N, layers_dimensions[-1])
        assert jnp.all(jnp.isfinite(out))
        assert jnp.allclose(out, ref, rtol=2e-4, atol=2e-4), \
            float(jnp.max(jnp.abs(out - ref)))
    print("KERNEL_OK")
</pallas_src>

<mosaic_0001>
module attributes {stable_mosaic.version = 11 : i64} {
  func.func @fused_sage_kernel(%arg0: i32, %arg1: i32, %arg2: memref<3xi32, #tpu.memory_space<smem>>, %arg3: memref<3xi32, #tpu.memory_space<smem>>, %arg4: memref<1x512xi32, #tpu.memory_space<vmem>>, %arg5: memref<512x24xf32, #tpu.memory_space<vmem>>, %arg6: memref<128x128xf32, #tpu.memory_space<vmem>>, %arg7: memref<128x128xf32, #tpu.memory_space<vmem>>, %arg8: memref<24x128xf32, #tpu.memory_space<vmem>>, %arg9: memref<1x128xf32, #tpu.memory_space<vmem>>, %arg10: memref<1x128xf32, #tpu.memory_space<vmem>>, %arg11: memref<1x128xf32, #tpu.memory_space<vmem>>, %arg12: memref<128x128xf32, #tpu.memory_space<vmem>>, %arg13: memref<24x128xf32, #tpu.memory_space<vmem>>, %arg14: memref<1x128xf32, #tpu.memory_space<vmem>>, %arg15: memref<1x128xf32, #tpu.memory_space<vmem>>, %arg16: memref<1x128xf32, #tpu.memory_space<vmem>>, %arg17: memref<128x128xf32, #tpu.memory_space<vmem>>, %arg18: memref<128x24xf32, #tpu.memory_space<vmem>>) attributes {dimension_semantics = [#tpu.dimension_semantics<parallel>, #tpu.dimension_semantics<arbitrary>], iteration_bounds = array<i64: 3, 3>, scalar_prefetch = 2 : i64, scratch_operands = 1 : i64, tpu.core_type = #tpu.core_type<tc>, window_params = [{transform_indices = @transform_0, window_bounds = array<i64: 1, 512>}, {transform_indices = @transform_1, window_bounds = array<i64: 512, 24>}, {transform_indices = @transform_2, window_bounds = array<i64: 128, 128>}, {pipeline_mode = #tpu.pipeline_mode<synchronous>, transform_indices = @transform_3, window_bounds = array<i64: 128, 128>}, {pipeline_mode = #tpu.pipeline_mode<synchronous>, transform_indices = @transform_4, window_bounds = array<i64: 24, 128>}, {pipeline_mode = #tpu.pipeline_mode<synchronous>, transform_indices = @transform_5, window_bounds = array<i64: 1, 128>}, {pipeline_mode = #tpu.pipeline_mode<synchronous>, transform_indices = @transform_6, window_bounds = array<i64: 1, 128>}, {pipeline_mode = #tpu.pipeline_mode<synchronous>, transform_indices = @transform_7, window_bounds = array<i64: 1, 128>}, {pipeline_mode = #tpu.pipeline_mode<synchronous>, transform_indices = @transform_8, window_bounds = array<i64: 128, 128>}, {pipeline_mode = #tpu.pipeline_mode<synchronous>, transform_indices = @transform_9, window_bounds = array<i64: 24, 128>}, {pipeline_mode = #tpu.pipeline_mode<synchronous>, transform_indices = @transform_10, window_bounds = array<i64: 1, 128>}, {pipeline_mode = #tpu.pipeline_mode<synchronous>, transform_indices = @transform_11, window_bounds = array<i64: 1, 128>}, {pipeline_mode = #tpu.pipeline_mode<synchronous>, transform_indices = @transform_12, window_bounds = array<i64: 1, 128>}, {transform_indices = @transform_13, window_bounds = array<i64: 128, 128>}]} {
    %c0_i32 = arith.constant 0 : i32
    %0 = arith.cmpi eq, %arg1, %c0_i32 : i32
    %1 = arith.extui %0 : i1 to i32
    %c0_i32_0 = arith.constant 0 : i32
    %2 = arith.cmpi ne, %1, %c0_i32_0 : i32
    scf.if %2 {
      %cst = arith.constant 0.000000e+00 : f32
      %11 = vector.broadcast %cst : f32 to vector<128x24xf32>
      %c0 = arith.constant 0 : index
      %c0_3 = arith.constant 0 : index
      %12 = vector.load %arg18[%c0, %c0_3] : memref<128x24xf32, #tpu.memory_space<vmem>>, vector<128x24xf32>
      tpu.vector_store %arg18[%c0, %c0_3], %11 {strides = array<i32>} : memref<128x24xf32, #tpu.memory_space<vmem>>, vector<128x24xf32>,
    } else {
    }
    %3 = arith.index_cast %arg0 : i32 to index
    %4 = memref.load %arg3[%3] : memref<3xi32, #tpu.memory_space<smem>>
    %5 = arith.cmpi slt, %arg1, %4 : i32
    %6 = arith.extui %5 : i1 to i32
    %c0_i32_1 = arith.constant 0 : i32
    %7 = arith.cmpi ne, %6, %c0_i32_1 : i32
    scf.if %7 {
      %11 = tpu.iota {dimensions = array<i32: 0>} : vector<128x1xi32>
      %c128_i32 = arith.constant 128 : i32
      %12 = arith.muli %arg0, %c128_i32 : i32
      %13 = vector.broadcast %12 : i32 to vector<128x1xi32>
      %14 = arith.addi %11, %13 : vector<128x1xi32>
      %c0 = arith.constant 0 : index
      %c0_3 = arith.constant 0 : index
      %15 = vector.load %arg4[%c0, %c0_3] : memref<1x512xi32, #tpu.memory_space<vmem>>, vector<1x512xi32>
      %16 = vector.broadcast %14 : vector<128x1xi32> to vector<128x512xi32>
      %17 = vector.broadcast %15 : vector<1x512xi32> to vector<128x512xi32>
      %18 = arith.cmpi eq, %16, %17 : vector<128x512xi32>
      %cst = arith.constant 1.000000e+00 : f32
      %cst_4 = arith.constant 0.000000e+00 : f32
      %19 = vector.broadcast %cst : f32 to vector<128x512xf32>
      %20 = vector.broadcast %cst_4 : f32 to vector<128x512xf32>
      %21 = arith.select %18, %19, %20 : vector<128x512xi1>, vector<128x512xf32>
      %c0_5 = arith.constant 0 : index
      %c0_6 = arith.constant 0 : index
      %22 = vector.load %arg18[%c0_5, %c0_6] : memref<128x24xf32, #tpu.memory_space<vmem>>, vector<128x24xf32>
      %c0_7 = arith.constant 0 : index
      %c0_8 = arith.constant 0 : index
      %23 = vector.load %arg5[%c0_7, %c0_8] : memref<512x24xf32, #tpu.memory_space<vmem>>, vector<512x24xf32>
      %cst_9 = arith.constant dense<0.000000e+00> : vector<128x24xf32>
      %24 = tpu.matmul %21, %23, %cst_9 {dimension_numbers = #tpu.dot_dimension_numbers<[1], [0], [0], [1], [0, 0, 1, 1], [], []>} : vector<128x512xf32>, vector<512x24xf32>, vector<128x24xf32> -> vector<128x24xf32>
      %25 = arith.addf %22, %24 : vector<128x24xf32>
      %c0_10 = arith.constant 0 : index
      %c0_11 = arith.constant 0 : index
      %26 = vector.load %arg18[%c0_10, %c0_11] : memref<128x24xf32, #tpu.memory_space<vmem>>, vector<128x24xf32>
      tpu.vector_store %arg18[%c0_10, %c0_11], %25 {strides = array<i32>} : memref<128x24xf32, #tpu.memory_space<vmem>>, vector<128x24xf32>,
    } else {
    }
    %c2_i32 = arith.constant 2 : i32
    %8 = arith.cmpi eq, %arg1, %c2_i32 : i32
    %9 = arith.extui %8 : i1 to i32
    %c0_i32_2 = arith.constant 0 : i32
    %10 = arith.cmpi ne, %9, %c0_i32_2 : i32
    scf.if %10 {
      %c0 = arith.constant 0 : index
      %c0_3 = arith.constant 0 : index
      %11 = vector.load %arg18[%c0, %c0_3] : memref<128x24xf32, #tpu.memory_space<vmem>>, vector<128x24xf32>
      %c0_4 = arith.constant 0 : index
      %c0_5 = arith.constant 0 : index
      %12 = vector.load %arg6[%c0_4, %c0_5] : memref<128x128xf32, #tpu.memory_space<vmem>>, vector<128x128xf32>
      %c0_6 = arith.constant 0 : index
      %c0_7 = arith.constant 0 : index
      %13 = vector.load %arg7[%c0_6, %c0_7] : memref<128x128xf32, #tpu.memory_space<vmem>>, vector<128x128xf32>
      %cst = arith.constant dense<0.000000e+00> : vector<128x128xf32>
      %14 = tpu.matmul %12, %13, %cst {dimension_numbers = #tpu.dot_dimension_numbers<[1], [0], [0], [1], [0, 0, 1, 1], [], []>} : vector<128x128xf32>, vector<128x128xf32>, vector<128x128xf32> -> vector<128x128xf32>
      %c0_8 = arith.constant 0 : index
      %c0_9 = arith.constant 0 : index
      %15 = vector.load %arg8[%c0_8, %c0_9] : memref<24x128xf32, #tpu.memory_space<vmem>>, vector<24x128xf32>
      %cst_10 = arith.constant dense<0.000000e+00> : vector<128x128xf32>
      %16 = tpu.matmul %11, %15, %cst_10 {dimension_numbers = #tpu.dot_dimension_numbers<[1], [0], [0], [1], [0, 0, 1, 1], [], []>} : vector<128x24xf32>, vector<24x128xf32>, vector<128x128xf32> -> vector<128x128xf32>
      %17 = arith.addf %14, %16 : vector<128x128xf32>
      %c0_11 = arith.constant 0 : index
      %c0_12 = arith.constant 0 : index
      %18 = vector.load %arg9[%c0_11, %c0_12] : memref<1x128xf32, #tpu.memory_space<vmem>>, vector<1x128xf32>
      %19 = vector.broadcast %18 : vector<1x128xf32> to vector<128x128xf32>
      %20 = arith.addf %17, %19 : vector<128x128xf32>
      %cst_13 = arith.constant dense<0.000000e+00> : vector<128xf32>
      %21 = vector.multi_reduction <add>, %20, %cst_13 [1] : vector<128x128xf32> to vector<128xf32>
      %22 = vector.shape_cast %21 : vector<128xf32> to vector<128x1xf32>
      %cst_14 = arith.constant 3.125000e-02 : f32
      %23 = vector.broadcast %cst_14 : f32 to vector<128x1xf32>
      %24 = arith.mulf %22, %23 : vector<128x1xf32>
      %25 = arith.mulf %20, %20 : vector<128x128xf32>
      %cst_15 = arith.constant dense<0.000000e+00> : vector<128xf32>
      %26 = vector.multi_reduction <add>, %25, %cst_15 [1] : vector<128x128xf32> to vector<128xf32>
      %27 = vector.shape_cast %26 : vector<128xf32> to vector<128x1xf32>
      %cst_16 = arith.constant 3.125000e-02 : f32
      %28 = vector.broadcast %cst_16 : f32 to vector<128x1xf32>
      %29 = arith.mulf %27, %28 : vector<128x1xf32>
      %30 = arith.mulf %24, %24 : vector<128x1xf32>
      %31 = arith.subf %29, %30 : vector<128x1xf32>
      %32 = vector.broadcast %24 : vector<128x1xf32> to vector<128x128xf32>
      %33 = arith.subf %20, %32 : vector<128x128xf32>
      %cst_17 = arith.constant 9.99999974E-6 : f32
      %34 = vector.broadcast %cst_17 : f32 to vector<128x1xf32>
      %35 = arith.addf %31, %34 : vector<128x1xf32>
      %36 = math.rsqrt %35 : vector<128x1xf32>
      %37 = vector.broadcast %36 : vector<128x1xf32> to vector<128x128xf32>
      %38 = arith.mulf %33, %37 : vector<128x128xf32>
      %c0_18 = arith.constant 0 : index
      %c0_19 = arith.constant 0 : index
      %39 = vector.load %arg10[%c0_18, %c0_19] : memref<1x128xf32, #tpu.memory_space<vmem>>, vector<1x128xf32>
      %40 = vector.broadcast %39 : vector<1x128xf32> to vector<128x128xf32>
      %41 = arith.mulf %38, %40 : vector<128x128xf32>
      %c0_20 = arith.constant 0 : index
      %c0_21 = arith.constant 0 : index
      %42 = vector.load %arg11[%c0_20, %c0_21] : memref<1x128xf32, #tpu.memory_space<vmem>>, vector<1x128xf32>
      %43 = vector.broadcast %42 : vector<1x128xf32> to vector<128x128xf32>
      %44 = arith.addf %41, %43 : vector<128x128xf32>
      %cst_22 = arith.constant 0.000000e+00 : f32
      %45 = vector.broadcast %cst_22 : f32 to vector<128x128xf32>
      %46 = arith.maximumf %44, %45 : vector<128x128xf32>
      %c0_23 = arith.constant 0 : index
      %c0_24 = arith.constant 0 : index
      %47 = vector.load %arg12[%c0_23, %c0_24] : memref<128x128xf32, #tpu.memory_space<vmem>>, vector<128x128xf32>
      %cst_25 = arith.constant dense<0.000000e+00> : vector<128x128xf32>
      %48 = tpu.matmul %46, %47, %cst_25 {dimension_numbers = #tpu.dot_dimension_numbers<[1], [0], [0], [1], [0, 0, 1, 1], [], []>} : vector<128x128xf32>, vector<128x128xf32>, vector<128x128xf32> -> vector<128x128xf32>
      %c0_26 = arith.constant 0 : index
      %c0_27 = arith.constant 0 : index
      %49 = vector.load %arg13[%c0_26, %c0_27] : memref<24x128xf32, #tpu.memory_space<vmem>>, vector<24x128xf32>
      %cst_28 = arith.constant dense<0.000000e+00> : vector<128x128xf32>
      %50 = tpu.matmul %11, %49, %cst_28 {dimension_numbers = #tpu.dot_dimension_numbers<[1], [0], [0], [1], [0, 0, 1, 1], [], []>} : vector<128x24xf32>, vector<24x128xf32>, vector<128x128xf32> -> vector<128x128xf32>
      %51 = arith.addf %48, %50 : vector<128x128xf32>
      %c0_29 = arith.constant 0 : index
      %c0_30 = arith.constant 0 : index
      %52 = vector.load %arg14[%c0_29, %c0_30] : memref<1x128xf32, #tpu.memory_space<vmem>>, vector<1x128xf32>
      %53 = vector.broadcast %52 : vector<1x128xf32> to vector<128x128xf32>
      %54 = arith.addf %51, %53 : vector<128x128xf32>
      %cst_31 = arith.constant dense<0.000000e+00> : vector<128xf32>
      %55 = vector.multi_reduction <add>, %54, %cst_31 [1] : vector<128x128xf32> to vector<128xf32>
      %56 = vector.shape_cast %55 : vector<128xf32> to vector<128x1xf32>
      %cst_32 = arith.constant 3.125000e-02 : f32
      %57 = vector.broadcast %cst_32 : f32 to vector<128x1xf32>
      %58 = arith.mulf %56, %57 : vector<128x1xf32>
      %59 = arith.mulf %54, %54 : vector<128x128xf32>
      %cst_33 = arith.constant dense<0.000000e+00> : vector<128xf32>
      %60 = vector.multi_reduction <add>, %59, %cst_33 [1] : vector<128x128xf32> to vector<128xf32>
      %61 = vector.shape_cast %60 : vector<128xf32> to vector<128x1xf32>
      %cst_34 = arith.constant 3.125000e-02 : f32
      %62 = vector.broadcast %cst_34 : f32 to vector<128x1xf32>
      %63 = arith.mulf %61, %62 : vector<128x1xf32>
      %64 = arith.mulf %58, %58 : vector<128x1xf32>
      %65 = arith.subf %63, %64 : vector<128x1xf32>
      %66 = vector.broadcast %58 : vector<128x1xf32> to vector<128x128xf32>
      %67 = arith.subf %54, %66 : vector<128x128xf32>
      %cst_35 = arith.constant 9.99999974E-6 : f32
      %68 = vector.broadcast %cst_35 : f32 to vector<128x1xf32>
      %69 = arith.addf %65, %68 : vector<128x1xf32>
      %70 = math.rsqrt %69 : vector<128x1xf32>
      %71 = vector.broadcast %70 : vector<128x1xf32> to vector<128x128xf32>
      %72 = arith.mulf %67, %71 : vector<128x128xf32>
      %c0_36 = arith.constant 0 : index
      %c0_37 = arith.constant 0 : index
      %73 = vector.load %arg15[%c0_36, %c0_37] : memref<1x128xf32, #tpu.memory_space<vmem>>, vector<1x128xf32>
      %74 = vector.broadcast %73 : vector<1x128xf32> to vector<128x128xf32>
      %75 = arith.mulf %72, %74 : vector<128x128xf32>
      %c0_38 = arith.constant 0 : index
      %c0_39 = arith.constant 0 : index
      %76 = vector.load %arg16[%c0_38, %c0_39] : memref<1x128xf32, #tpu.memory_space<vmem>>, vector<1x128xf32>
      %77 = vector.broadcast %76 : vector<1x128xf32> to vector<128x128xf32>
      %78 = arith.addf %75, %77 : vector<128x128xf32>
      %cst_40 = arith.constant 0.000000e+00 : f32
      %79 = vector.broadcast %cst_40 : f32 to vector<128x128xf32>
      %80 = arith.maximumf %78, %79 : vector<128x128xf32>
      %c0_41 = arith.constant 0 : index
      %c0_42 = arith.constant 0 : index
      %81 = vector.load %arg17[%c0_41, %c0_42] : memref<128x128xf32, #tpu.memory_space<vmem>>, vector<128x128xf32>
      tpu.vector_store %arg17[%c0_41, %c0_42], %80 {strides = array<i32>} : memref<128x128xf32, #tpu.memory_space<vmem>>, vector<128x128xf32>,
    } else {
    }
    return
  }
  func.func @transform_0(%arg0: i32, %arg1: i32, %arg2: memref<3xi32, #tpu.memory_space<smem>>, %arg3: memref<3xi32, #tpu.memory_space<smem>>) -> (i32, i32) {
    %0 = arith.index_cast %arg0 : i32 to index
    %1 = memref.load %arg2[%0] : memref<3xi32, #tpu.memory_space<smem>>
    %2 = arith.index_cast %arg0 : i32 to index
    %3 = memref.load %arg3[%2] : memref<3xi32, #tpu.memory_space<smem>>
    %c1_i32 = arith.constant 1 : i32
    %4 = arith.subi %3, %c1_i32 : i32
    %c0_i32 = arith.constant 0 : i32
    %5 = arith.maxsi %4, %c0_i32 : i32
    %6 = arith.minsi %arg1, %5 : i32
    %7 = arith.addi %1, %6 : i32
    %c0_i32_0 = arith.constant 0 : i32
    %c0_i32_1 = arith.constant 0 : i32
    return %c0_i32_0, %7 : i32, i32
  }
  func.func @transform_1(%arg0: i32, %arg1: i32, %arg2: memref<3xi32, #tpu.memory_space<smem>>, %arg3: memref<3xi32, #tpu.memory_space<smem>>) -> (i32, i32) {
    %0 = arith.index_cast %arg0 : i32 to index
    %1 = memref.load %arg2[%0] : memref<3xi32, #tpu.memory_space<smem>>
    %2 = arith.index_cast %arg0 : i32 to index
    %3 = memref.load %arg3[%2] : memref<3xi32, #tpu.memory_space<smem>>
    %c1_i32 = arith.constant 1 : i32
    %4 = arith.subi %3, %c1_i32 : i32
    %c0_i32 = arith.constant 0 : i32
    %5 = arith.maxsi %4, %c0_i32 : i32
    %6 = arith.minsi %arg1, %5 : i32
    %7 = arith.addi %1, %6 : i32
    %c0_i32_0 = arith.constant 0 : i32
    %c0_i32_1 = arith.constant 0 : i32
    return %7, %c0_i32_0 : i32, i32
  }
  func.func @transform_2(%arg0: i32, %arg1: i32, %arg2: memref<3xi32, #tpu.memory_space<smem>>, %arg3: memref<3xi32, #tpu.memory_space<smem>>) -> (i32, i32) {
    %c0_i32 = arith.constant 0 : i32
    %c0_i32_0 = arith.constant 0 : i32
    return %arg0, %c0_i32 : i32, i32
  }
  func.func @transform_3(%arg0: i32, %arg1: i32, %arg2: memref<3xi32, #tpu.memory_space<smem>>, %arg3: memref<3xi32, #tpu.memory_space<smem>>) -> (i32, i32) {
    %c0_i32 = arith.constant 0 : i32
    %c0_i32_0 = arith.constant 0 : i32
    %c0_i32_1 = arith.constant 0 : i32
    return %c0_i32, %c0_i32_0 : i32, i32
  }
  func.func @transform_4(%arg0: i32, %arg1: i32, %arg2: memref<3xi32, #tpu.memory_space<smem>>, %arg3: memref<3xi32, #tpu.memory_space<smem>>) -> (i32, i32) {
    %c0_i32 = arith.constant 0 : i32
    %c0_i32_0 = arith.constant 0 : i32
    %c0_i32_1 = arith.constant 0 : i32
    return %c0_i32, %c0_i32_0 : i32, i32
  }
  func.func @transform_5(%arg0: i32, %arg1: i32, %arg2: memref<3xi32, #tpu.memory_space<smem>>, %arg3: memref<3xi32, #tpu.memory_space<smem>>) -> (i32, i32) {
    %c0_i32 = arith.constant 0 : i32
    %c0_i32_0 = arith.constant 0 : i32
    %c0_i32_1 = arith.constant 0 : i32
    return %c0_i32, %c0_i32_0 : i32, i32
  }
  func.func @transform_6(%arg0: i32, %arg1: i32, %arg2: memref<3xi32, #tpu.memory_space<smem>>, %arg3: memref<3xi32, #tpu.memory_space<smem>>) -> (i32, i32) {
    %c0_i32 = arith.constant 0 : i32
    %c0_i32_0 = arith.constant 0 : i32
    %c0_i32_1 = arith.constant 0 : i32
    return %c0_i32, %c0_i32_0 : i32, i32
  }
  func.func @transform_7(%arg0: i32, %arg1: i32, %arg2: memref<3xi32, #tpu.memory_space<smem>>, %arg3: memref<3xi32, #tpu.memory_space<smem>>) -> (i32, i32) {
    %c0_i32 = arith.constant 0 : i32
    %c0_i32_0 = arith.constant 0 : i32
    %c0_i32_1 = arith.constant 0 : i32
    return %c0_i32, %c0_i32_0 : i32, i32
  }
  func.func @transform_8(%arg0: i32, %arg1: i32, %arg2: memref<3xi32, #tpu.memory_space<smem>>, %arg3: memref<3xi32, #tpu.memory_space<smem>>) -> (i32, i32) {
    %c0_i32 = arith.constant 0 : i32
    %c0_i32_0 = arith.constant 0 : i32
    %c0_i32_1 = arith.constant 0 : i32
    return %c0_i32, %c0_i32_0 : i32, i32
  }
  func.func @transform_9(%arg0: i32, %arg1: i32, %arg2: memref<3xi32, #tpu.memory_space<smem>>, %arg3: memref<3xi32, #tpu.memory_space<smem>>) -> (i32, i32) {
    %c0_i32 = arith.constant 0 : i32
    %c0_i32_0 = arith.constant 0 : i32
    %c0_i32_1 = arith.constant 0 : i32
    return %c0_i32, %c0_i32_0 : i32, i32
  }
  func.func @transform_10(%arg0: i32, %arg1: i32, %arg2: memref<3xi32, #tpu.memory_space<smem>>, %arg3: memref<3xi32, #tpu.memory_space<smem>>) -> (i32, i32) {
    %c0_i32 = arith.constant 0 : i32
    %c0_i32_0 = arith.constant 0 : i32
    %c0_i32_1 = arith.constant 0 : i32
    return %c0_i32, %c0_i32_0 : i32, i32
  }
  func.func @transform_11(%arg0: i32, %arg1: i32, %arg2: memref<3xi32, #tpu.memory_space<smem>>, %arg3: memref<3xi32, #tpu.memory_space<smem>>) -> (i32, i32) {
    %c0_i32 = arith.constant 0 : i32
    %c0_i32_0 = arith.constant 0 : i32
    %c0_i32_1 = arith.constant 0 : i32
    return %c0_i32, %c0_i32_0 : i32, i32
  }
  func.func @transform_12(%arg0: i32, %arg1: i32, %arg2: memref<3xi32, #tpu.memory_space<smem>>, %arg3: memref<3xi32, #tpu.memory_space<smem>>) -> (i32, i32) {
    %c0_i32 = arith.constant 0 : i32
    %c0_i32_0 = arith.constant 0 : i32
    %c0_i32_1 = arith.constant 0 : i32
    return %c0_i32, %c0_i32_0 : i32, i32
  }
  func.func @transform_13(%arg0: i32, %arg1: i32, %arg2: memref<3xi32, #tpu.memory_space<smem>>, %arg3: memref<3xi32, #tpu.memory_space<smem>>) -> (i32, i32) {
    %c0_i32 = arith.constant 0 : i32
    %c0_i32_0 = arith.constant 0 : i32
    return %arg0, %c0_i32 : i32, i32
  }
}

</mosaic_0001>

<llo_original>
// kernel: tpu_custom_call.1
$region0: #{tpu_custom_call.1}
  #allocation0 [shape = 'u32[]', space=smem, size = 0x4, offset = 0x4, fixed_abs, tag = 'smem constant byte address 0x4 - core index']
  #allocation1 [shape = 'u32[72,128]{1,0:T(1,128)}', space=vmem, size = 0x9000, scoped, tag = 'internal scratch']
  #allocation2 [shape = 'f32[128,24]{1,0:T(8,128)}', space=vmem, size = 0x10000, scoped, tag = 'scratch operand']
  #allocation3 [shape = 's32[1]{0}', space=sflag, size = 0x4, scoped, tag = 'scoped memory for tpu_custom_call.1']
  #allocation4 [shape = 'u8[512]{0}', space=smem, size = 0x200, scoped, tag = 'prefetched SMEM operand 0']
  #allocation5 [shape = 'u8[512]{0}', space=smem, size = 0x200, scoped, tag = 'prefetched SMEM operand 1']
  %s0 = inlined_call_operand.vmem [shape: s32[3], index: 0, kind: input, shape index: {}]
  %s1 = inlined_call_operand.vmem [shape: s32[3], index: 1, kind: input, shape index: {}]
  %s2 = inlined_call_operand.vmem [shape: s32[1,1536], index: 2, kind: input, shape index: {}]
  %s3 = inlined_call_operand.vmem [shape: f32[1536,24], index: 3, kind: input, shape index: {}]
  %s4 = inlined_call_operand.vmem [shape: f32[384,128], index: 4, kind: input, shape index: {}]
  %s5 = inlined_call_operand.vmem [shape: f32[128,128], index: 5, kind: input, shape index: {}]
  %s6 = inlined_call_operand.vmem [shape: f32[24,128], index: 6, kind: input, shape index: {}]
  %s7 = inlined_call_operand.vmem [shape: f32[1,128], index: 7, kind: input, shape index: {}]
  %s8 = inlined_call_operand.vmem [shape: f32[1,128], index: 8, kind: input, shape index: {}]
  %s9 = inlined_call_operand.vmem [shape: f32[1,128], index: 9, kind: input, shape index: {}]
  %s10 = inlined_call_operand.vmem [shape: f32[128,128], index: 10, kind: input, shape index: {}]
  %s11 = inlined_call_operand.vmem [shape: f32[24,128], index: 11, kind: input, shape index: {}]
  %s12 = inlined_call_operand.vmem [shape: f32[1,128], index: 12, kind: input, shape index: {}]
  %s13 = inlined_call_operand.vmem [shape: f32[1,128], index: 13, kind: input, shape index: {}]
  %s14 = inlined_call_operand.vmem [shape: f32[1,128], index: 14, kind: input, shape index: {}]
  %s15 = inlined_call_operand.hbm [shape: f32[384,128], index: 15, kind: output, shape index: {}]
  %s16 = sld [smem:[#allocation0]]
  $region97: #{tpu_custom_call.1} parent=0
    _
  %s18 = ssub.s32 1, %s16
  %s19 = scalar_select 0, %s18, %s16
  %s21 = sshll.u32 %s0, 4
  %s22 = int_to_ptr.vmem [resolvable:$true] %s21
  %24 = dma.vmem_to_smem %s22, 16, [#allocation4], [#allocation3]
  %s26 = sshll.u32 %s1, 4
  %s27 = int_to_ptr.vmem [resolvable:$true] %s26
  %29 = dma.vmem_to_smem %s27, 16, [#allocation5], [#allocation3]
  %31 = dma.done [#allocation3], 32
  %32 = sfence
  $region1: #{tpu_custom_call.1} parent=0
    #allocation6 [shape = 'u8[131072]{0}', space=vmem, size = 0x20000, scoped, tag = 'output window, operand 0']
    #allocation7 [shape = 's32[2]{0}', space=sflag, size = 0x8, scoped, tag = 'scoped memory for tpu_custom_call.1']
    %33 = vsyncpa [#allocation7], 0
    %s34 = scalar_lea.sflag [#allocation7], 1
    %35 = vsyncpa %s34, 0
    loop: start=0, step=1, limit=11
    $region2: #{tpu_custom_call.1} parent=1 // loop_pre_header
      _
    $region3: #{tpu_custom_call.1} parent=1 // loop_header
      %s37 = sphi 0, %s41
      %p38 = scmp.ge.s32.totalorder %s37, 11
      %s44 = sphi 0, %s56
      %s45 = sphi 0, %s52
      %s46 = sphi 0, %s44
      %s47 = sphi 0, %s45
      %s48 = sphi 0, %s46
      %s49 = sphi 0, %s47
      %s75 = sphi 0, %s77
      %s78 = sphi 0, %s75
      %s79 = sphi 0, %s78
      %s95 = sphi 0, %s79
      %s117 = sphi 0, %s119
      %s120 = sphi 0, %s117
      %s121 = sphi 0, %s120
      %s137 = sphi 0, %s121
      %s143 = sphi 0, %s145
      %s146 = sphi 0, %s143
      %s147 = sphi 0, %s146
      %s163 = sphi 0, %s147
      %s167 = sphi 0, %s167
      %s169 = sphi 0, %s167
      %s170 = sphi 0, %s169
      %s184 = sphi 0, %s170
      %s188 = sphi 0, %s188
      %s190 = sphi 0, %s188
      %s191 = sphi 0, %s190
      %s205 = sphi 0, %s191
      %s209 = sphi 0, %s209
      %s211 = sphi 0, %s209
      %s212 = sphi 0, %s211
      %s226 = sphi 0, %s212
      %s230 = sphi 0, %s230
      %s232 = sphi 0, %s230
      %s233 = sphi 0, %s232
      %s247 = sphi 0, %s233
      %s251 = sphi 0, %s251
      %s253 = sphi 0, %s251
      %s254 = sphi 0, %s253
      %s268 = sphi 0, %s254
      %s272 = sphi 0, %s272
      %s274 = sphi 0, %s272
      %s275 = sphi 0, %s274
      %s289 = sphi 0, %s275
      %s293 = sphi 0, %s293
      %s295 = sphi 0, %s293
      %s296 = sphi 0, %s295
      %s310 = sphi 0, %s296
      %s314 = sphi 0, %s314
      %s316 = sphi 0, %s314
      %s317 = sphi 0, %s316
      %s331 = sphi 0, %s317
      %s335 = sphi 0, %s335
      %s337 = sphi 0, %s335
      %s338 = sphi 0, %s337
      %s352 = sphi 0, %s338
      %s356 = sphi 0, %s356
      %s358 = sphi 0, %s356
      %s359 = sphi 0, %s358
      %s373 = sphi 0, %s359
      %s379 = sphi 0, %s381
      %s382 = sphi 0, %s379
      %s383 = sphi 0, %s382
      %s399 = sphi 0, %s383
    $region4: #{tpu_custom_call.1} parent=1 // loop_header_branch
      %40 = sbr.rel (%p38) target = $region8
    $region5: #{tpu_custom_call.1} parent=1 // loop_body
      %s42 = ssub.s32 %s37, 1
      %s43 = ssub.s32 %s37, 2
      %s50 = sadd.s32 1, %s45
      %p51 = scmp.ge.s32.totalorder %s50, 3
      %s52 = scalar_select %p51, 0, %s50
      %s53 = sadd.s32 1, %s44
      %s54 = scalar_select %p51, %s53, %s44
      %p55 = scmp.ge.s32.totalorder %s54, 3
      %s56 = scalar_select %p55, 0, %s54
      %s57 = sld [smem:[#allocation4 + %s44]]
      %s58 = sld [smem:[#allocation5 + %s44]]
      %s59 = ssub.s32 %s58, 1
      %p60 = scmp.gt.s32.totalorder %s59, 0
      %s61 = scalar_select %p60, %s59, 0
      %p62 = scmp.lt.s32.totalorder %s45, %s61
      %s63 = scalar_select %p62, %s45, %s61
      %s64 = sadd.s32 %s57, %s63
      %s65 = sld [smem:[#allocation4 + %s56]]
      %s66 = sld [smem:[#allocation5 + %s56]]
      %s67 = ssub.s32 %s66, 1
      %p68 = scmp.gt.s32.totalorder %s67, 0
      %s69 = scalar_select %p68, %s67, 0
      %p70 = scmp.lt.s32.totalorder %s52, %s69
      %s71 = scalar_select %p70, %s52, %s69
      %s72 = sadd.s32 %s65, %s71
      %s73 = ssub.s32 %s64, %s72
      %p74 = scmp.eq.s32.totalorder %s73, 0
      %s76 = sadd.s32 %s75, 1
      %s77 = scalar_select %p74, %s75, %s76
      %p80 = pneg %p74
      %p81 = scmp.eq.s32.totalorder %s37, 8
      %p82 = por %p80, %p81
      %p83 = scmp.ne.s32.totalorder %s75, %s78
      %p84 = scmp.eq.s32.totalorder %s37, 0
      %p85 = por %p83, %p84
      %p86 = scmp.ne.s32.totalorder %s75, %s78
      %p87 = scmp.eq.s32.totalorder %s42, 8
      %p88 = por %p86, %p87
      %p89 = scmp.ne.s32.totalorder %s78, %s79
      %p90 = scmp.eq.s32.totalorder %s42, 0
      %p91 = por %p89, %p90
      %p92 = scmp.ne.s32.totalorder %s78, %s79
      %p93 = scmp.eq.s32.totalorder %s43, 8
      %p94 = por %p92, %p93
      %p96 = scmp.ne.s32.totalorder %s79, %s95
      %p97 = scmp.eq.s32.totalorder %s43, 0
      %p98 = por %p96, %p97
      %s99 = sld [smem:[#allocation4 + %s44]]
      %s100 = sld [smem:[#allocation5 + %s44]]
      %s101 = ssub.s32 %s100, 1
      %p102 = scmp.gt.s32.totalorder %s101, 0
      %s103 = scalar_select %p102, %s101, 0
      %p104 = scmp.lt.s32.totalorder %s45, %s103
      %s105 = scalar_select %p104, %s45, %s103
      %s106 = sadd.s32 %s99, %s105
      %s107 = sld [smem:[#allocation4 + %s56]]
      %s108 = sld [smem:[#allocation5 + %s56]]
      %s109 = ssub.s32 %s108, 1
      %p110 = scmp.gt.s32.totalorder %s109, 0
      %s111 = scalar_select %p110, %s109, 0
      %p112 = scmp.lt.s32.totalorder %s52, %s111
      %s113 = scalar_select %p112, %s52, %s111
      %s114 = sadd.s32 %s107, %s113
      %s115 = ssub.s32 %s106, %s114
      %p116 = scmp.eq.s32.totalorder %s115, 0
      %s118 = sadd.s32 %s117, 1
      %s119 = scalar_select %p116, %s117, %s118
      %p122 = pneg %p116
      %p123 = scmp.eq.s32.totalorder %s37, 8
      %p124 = por %p122, %p123
      %p125 = scmp.ne.s32.totalorder %s117, %s120
      %p126 = scmp.eq.s32.totalorder %s37, 0
      %p127 = por %p125, %p126
      %p128 = scmp.ne.s32.totalorder %s117, %s120
      %p129 = scmp.eq.s32.totalorder %s42, 8
      %p130 = por %p128, %p129
      %p131 = scmp.ne.s32.totalorder %s120, %s121
      %p132 = scmp.eq.s32.totalorder %s42, 0
      %p133 = por %p131, %p132
      %p134 = scmp.ne.s32.totalorder %s120, %s121
      %p135 = scmp.eq.s32.totalorder %s43, 8
      %p136 = por %p134, %p135
      %p138 = scmp.ne.s32.totalorder %s121, %s137
      %p139 = scmp.eq.s32.totalorder %s43, 0
      %p140 = por %p138, %p139
      %s141 = ssub.s32 %s44, %s56
      %p142 = scmp.eq.s32.totalorder %s141, 0
      %s144 = sadd.s32 %s143, 1
      %s145 = scalar_select %p142, %s143, %s144
      %p148 = pneg %p142
      %p149 = scmp.eq.s32.totalorder %s37, 8
      %p150 = por %p148, %p149
      %p151 = scmp.ne.s32.totalorder %s143, %s146
      %p152 = scmp.eq.s32.totalorder %s37, 0
      %p153 = por %p151, %p152
      %p154 = scmp.ne.s32.totalorder %s143, %s146
      %p155 = scmp.eq.s32.totalorder %s42, 8
      %p156 = por %p154, %p155
      %p157 = scmp.ne.s32.totalorder %s146, %s147
      %p158 = scmp.eq.s32.totalorder %s42, 0
      %p159 = por %p157, %p158
      %p160 = scmp.ne.s32.totalorder %s146, %s147
      %p161 = scmp.eq.s32.totalorder %s43, 8
      %p162 = por %p160, %p161
      %p164 = scmp.ne.s32.totalorder %s147, %s163
      %p165 = scmp.eq.s32.totalorder %s43, 0
      %p166 = por %p164, %p165
      %s168 = sadd.s32 %s167, 1
      %p171 = scmp.eq.s32.totalorder %s37, 8
      %p172 = scmp.ne.s32.totalorder %s167, %s169
      %p173 = scmp.eq.s32.totalorder %s37, 0
      %p174 = por %p172, %p173
      %p175 = scmp.ne.s32.totalorder %s167, %s169
      %p176 = scmp.eq.s32.totalorder %s42, 8
      %p177 = por %p175, %p176
      %p178 = scmp.ne.s32.totalorder %s169, %s170
      %p179 = scmp.eq.s32.totalorder %s42, 0
      %p180 = por %p178, %p179
      %p181 = scmp.ne.s32.totalorder %s169, %s170
      %p182 = scmp.eq.s32.totalorder %s43, 8
      %p183 = por %p181, %p182
      %p185 = scmp.ne.s32.totalorder %s170, %s184
      %p186 = scmp.eq.s32.totalorder %s43, 0
      %p187 = por %p185, %p186
      %s189 = sadd.s32 %s188, 1
      %p192 = scmp.eq.s32.totalorder %s37, 8
      %p193 = scmp.ne.s32.totalorder %s188, %s190
      %p194 = scmp.eq.s32.totalorder %s37, 0
      %p195 = por %p193, %p194
      %p196 = scmp.ne.s32.totalorder %s188, %s190
      %p197 = scmp.eq.s32.totalorder %s42, 8
      %p198 = por %p196, %p197
      %p199 = scmp.ne.s32.totalorder %s190, %s191
      %p200 = scmp.eq.s32.totalorder %s42, 0
      %p201 = por %p199, %p200
      %p202 = scmp.ne.s32.totalorder %s190, %s191
      %p203 = scmp.eq.s32.totalorder %s43, 8
      %p204 = por %p202, %p203
      %p206 = scmp.ne.s32.totalorder %s191, %s205
      %p207 = scmp.eq.s32.totalorder %s43, 0
      %p208 = por %p206, %p207
      %s210 = sadd.s32 %s209, 1
      %p213 = scmp.eq.s32.totalorder %s37, 8
      %p214 = scmp.ne.s32.totalorder %s209, %s211
      %p215 = scmp.eq.s32.totalorder %s37, 0
      %p216 = por %p214, %p215
      %p217 = scmp.ne.s32.totalorder %s209, %s211
      %p218 = scmp.eq.s32.totalorder %s42, 8
      %p219 = por %p217, %p218
      %p220 = scmp.ne.s32.totalorder %s211, %s212
      %p221 = scmp.eq.s32.totalorder %s42, 0
      %p222 = por %p220, %p221
      %p223 = scmp.ne.s32.totalorder %s211, %s212
      %p224 = scmp.eq.s32.totalorder %s43, 8
      %p225 = por %p223, %p224
      %p227 = scmp.ne.s32.totalorder %s212, %s226
      %p228 = scmp.eq.s32.totalorder %s43, 0
      %p229 = por %p227, %p228
      %s231 = sadd.s32 %s230, 1
      %p234 = scmp.eq.s32.totalorder %s37, 8
      %p235 = scmp.ne.s32.totalorder %s230, %s232
      %p236 = scmp.eq.s32.totalorder %s37, 0
      %p237 = por %p235, %p236
      %p238 = scmp.ne.s32.totalorder %s230, %s232
      %p239 = scmp.eq.s32.totalorder %s42, 8
      %p240 = por %p238, %p239
      %p241 = scmp.ne.s32.totalorder %s232, %s233
      %p242 = scmp.eq.s32.totalorder %s42, 0
      %p243 = por %p241, %p242
      %p244 = scmp.ne.s32.totalorder %s232, %s233
      %p245 = scmp.eq.s32.totalorder %s43, 8
      %p246 = por %p244, %p245
      %p248 = scmp.ne.s32.totalorder %s233, %s247
      %p249 = scmp.eq.s32.totalorder %s43, 0
      %p250 = por %p248, %p249
      %s252 = sadd.s32 %s251, 1
      %p255 = scmp.eq.s32.totalorder %s37, 8
      %p256 = scmp.ne.s32.totalorder %s251, %s253
      %p257 = scmp.eq.s32.totalorder %s37, 0
      %p258 = por %p256, %p257
      %p259 = scmp.ne.s32.totalorder %s251, %s253
      %p260 = scmp.eq.s32.totalorder %s42, 8
      %p261 = por %p259, %p260
      %p262 = scmp.ne.s32.totalorder %s253, %s254
      %p263 = scmp.eq.s32.totalorder %s42, 0
      %p264 = por %p262, %p263
      %p265 = scmp.ne.s32.totalorder %s253, %s254
      %p266 = scmp.eq.s32.totalorder %s43, 8
      %p267 = por %p265, %p266
      %p269 = scmp.ne.s32.totalorder %s254, %s268
      %p270 = scmp.eq.s32.totalorder %s43, 0
      %p271 = por %p269, %p270
      %s273 = sadd.s32 %s272, 1
      %p276 = scmp.eq.s32.totalorder %s37, 8
      %p277 = scmp.ne.s32.totalorder %s272, %s274
      %p278 = scmp.eq.s32.totalorder %s37, 0
      %p279 = por %p277, %p278
      %p280 = scmp.ne.s32.totalorder %s272, %s274
      %p281 = scmp.eq.s32.totalorder %s42, 8
      %p282 = por %p280, %p281
      %p283 = scmp.ne.s32.totalorder %s274, %s275
      %p284 = scmp.eq.s32.totalorder %s42, 0
      %p285 = por %p283, %p284
      %p286 = scmp.ne.s32.totalorder %s274, %s275
      %p287 = scmp.eq.s32.totalorder %s43, 8
      %p288 = por %p286, %p287
      %p290 = scmp.ne.s32.totalorder %s275, %s289
      %p291 = scmp.eq.s32.totalorder %s43, 0
      %p292 = por %p290, %p291
      %s294 = sadd.s32 %s293, 1
      %p297 = scmp.eq.s32.totalorder %s37, 8
      %p298 = scmp.ne.s32.totalorder %s293, %s295
      %p299 = scmp.eq.s32.totalorder %s37, 0
      %p300 = por %p298, %p299
      %p301 = scmp.ne.s32.totalorder %s293, %s295
      %p302 = scmp.eq.s32.totalorder %s42, 8
      %p303 = por %p301, %p302
      %p304 = scmp.ne.s32.totalorder %s295, %s296
      %p305 = scmp.eq.s32.totalorder %s42, 0
      %p306 = por %p304, %p305
      %p307 = scmp.ne.s32.totalorder %s295, %s296
      %p308 = scmp.eq.s32.totalorder %s43, 8
      %p309 = por %p307, %p308
      %p311 = scmp.ne.s32.totalorder %s296, %s310
      %p312 = scmp.eq.s32.totalorder %s43, 0
      %p313 = por %p311, %p312
      %s315 = sadd.s32 %s314, 1
      %p318 = scmp.eq.s32.totalorder %s37, 8
      %p319 = scmp.ne.s32.totalorder %s314, %s316
      %p320 = scmp.eq.s32.totalorder %s37, 0
      %p321 = por %p319, %p320
      %p322 = scmp.ne.s32.totalorder %s314, %s316
      %p323 = scmp.eq.s32.totalorder %s42, 8
      %p324 = por %p322, %p323
      %p325 = scmp.ne.s32.totalorder %s316, %s317
      %p326 = scmp.eq.s32.totalorder %s42, 0
      %p327 = por %p325, %p326
      %p328 = scmp.ne.s32.totalorder %s316, %s317
      %p329 = scmp.eq.s32.totalorder %s43, 8
      %p330 = por %p328, %p329
      %p332 = scmp.ne.s32.totalorder %s317, %s331
      %p333 = scmp.eq.s32.totalorder %s43, 0
      %p334 = por %p332, %p333
      %s336 = sadd.s32 %s335, 1
      %p339 = scmp.eq.s32.totalorder %s37, 8
      %p340 = scmp.ne.s32.totalorder %s335, %s337
      %p341 = scmp.eq.s32.totalorder %s37, 0
      %p342 = por %p340, %p341
      %p343 = scmp.ne.s32.totalorder %s335, %s337
      %p344 = scmp.eq.s32.totalorder %s42, 8
      %p345 = por %p343, %p344
      %p346 = scmp.ne.s32.totalorder %s337, %s338
      %p347 = scmp.eq.s32.totalorder %s42, 0
      %p348 = por %p346, %p347
      %p349 = scmp.ne.s32.totalorder %s337, %s338
      %p350 = scmp.eq.s32.totalorder %s43, 8
      %p351 = por %p349, %p350
      %p353 = scmp.ne.s32.totalorder %s338, %s352
      %p354 = scmp.eq.s32.totalorder %s43, 0
      %p355 = por %p353, %p354
      %s357 = sadd.s32 %s356, 1
      %p360 = scmp.eq.s32.totalorder %s37, 8
      %p361 = scmp.ne.s32.totalorder %s356, %s358
      %p362 = scmp.eq.s32.totalorder %s37, 0
      %p363 = por %p361, %p362
      %p364 = scmp.ne.s32.totalorder %s356, %s358
      %p365 = scmp.eq.s32.totalorder %s42, 8
      %p366 = por %p364, %p365
      %p367 = scmp.ne.s32.totalorder %s358, %s359
      %p368 = scmp.eq.s32.totalorder %s42, 0
      %p369 = por %p367, %p368
      %p370 = scmp.ne.s32.totalorder %s358, %s359
      %p371 = scmp.eq.s32.totalorder %s43, 8
      %p372 = por %p370, %p371
      %p374 = scmp.ne.s32.totalorder %s359, %s373
      %p375 = scmp.eq.s32.totalorder %s43, 0
      %p376 = por %p374, %p375
      %s377 = ssub.s32 %s44, %s56
      %p378 = scmp.eq.s32.totalorder %s377, 0
      %s380 = sadd.s32 %s379, 1
      %s381 = scalar_select %p378, %s379, %s380
      %p384 = pneg %p378
      %p385 = scmp.eq.s32.totalorder %s37, 8
      %p386 = por %p384, %p385
      %p387 = scmp.ne.s32.totalorder %s379, %s382
      %p388 = scmp.eq.s32.totalorder %s37, 0
      %p389 = por %p387, %p388
      %p390 = scmp.ne.s32.totalorder %s379, %s382
      %p391 = scmp.eq.s32.totalorder %s42, 8
      %p392 = por %p390, %p391
      %p393 = scmp.ne.s32.totalorder %s382, %s383
      %p394 = scmp.eq.s32.totalorder %s42, 0
      %p395 = por %p393, %p394
      %p396 = scmp.ne.s32.totalorder %s382, %s383
      %p397 = scmp.eq.s32.totalorder %s43, 8
      %p398 = por %p396, %p397
      %p400 = scmp.ne.s32.totalorder %s383, %s399
      %p401 = scmp.eq.s32.totalorder %s43, 0
      %p402 = por %p400, %p401
      %p403 = scmp.le.s32.totalorder 1, %s37
      %p404 = scmp.lt.s32.totalorder %s37, 10
      %p405 = pnand %p403, %p404
      %p406 = pneg %p405
      // Predicated region
      $region9: #{tpu_custom_call.1} parent=5 // pred_check
        _
      $region10: #{tpu_custom_call.1} parent=5 // pred_check_branch
        %408 = sbr.rel (%p405) target = $region12
      $region11: #{tpu_custom_call.1} parent=5 // pred_region
        %s409 = ssub.s32 %s37, 1
        // Predicated region
        $region13: #{tpu_custom_call.1} parent=11 // pred_check
          %p410 = pneg %p180
        $region14: #{tpu_custom_call.1} parent=11 // pred_check_branch
          %412 = sbr.rel (%p410) target = $region16
        $region15: #{tpu_custom_call.1} parent=11 // pred_region
          _
        $region16: #{tpu_custom_call.1} parent=11 // pred_fallthru
          _
        // Predicated region
        $region17: #{tpu_custom_call.1} parent=11 // pred_check
          %p413 = pneg %p201
        $region18: #{tpu_custom_call.1} parent=11 // pred_check_branch
          %415 = sbr.rel (%p413) target = $region20
        $region19: #{tpu_custom_call.1} parent=11 // pred_region
          _
        $region20: #{tpu_custom_call.1} parent=11 // pred_fallthru
          _
        // Predicated region
        $region21: #{tpu_custom_call.1} parent=11 // pred_check
          %p416 = pneg %p222
        $region22: #{tpu_custom_call.1} parent=11 // pred_check_branch
          %418 = sbr.rel (%p416) target = $region24
        $region23: #{tpu_custom_call.1} parent=11 // pred_region
          _
        $region24: #{tpu_custom_call.1} parent=11 // pred_fallthru
          _
        // Predicated region
        $region25: #{tpu_custom_call.1} parent=11 // pred_check
          %p419 = pneg %p243
        $region26: #{tpu_custom_call.1} parent=11 // pred_check_branch
          %421 = sbr.rel (%p419) target = $region28
        $region27: #{tpu_custom_call.1} parent=11 // pred_region
          _
        $region28: #{tpu_custom_call.1} parent=11 // pred_fallthru
          _
        // Predicated region
        $region29: #{tpu_custom_call.1} parent=11 // pred_check
          %p422 = pneg %p264
        $region30: #{tpu_custom_call.1} parent=11 // pred_check_branch
          %424 = sbr.rel (%p422) target = $region32
        $region31: #{tpu_custom_call.1} parent=11 // pred_region
          _
        $region32: #{tpu_custom_call.1} parent=11 // pred_fallthru
          _
        // Predicated region
        $region33: #{tpu_custom_call.1} parent=11 // pred_check
          %p425 = pneg %p285
        $region34: #{tpu_custom_call.1} parent=11 // pred_check_branch
          %427 = sbr.rel (%p425) target = $region36
        $region35: #{tpu_custom_call.1} parent=11 // pred_region
          _
        $region36: #{tpu_custom_call.1} parent=11 // pred_fallthru
          _
        // Predicated region
        $region37: #{tpu_custom_call.1} parent=11 // pred_check
          %p428 = pneg %p306
        $region38: #{tpu_custom_call.1} parent=11 // pred_check_branch
          %430 = sbr.rel (%p428) target = $region40
        $region39: #{tpu_custom_call.1} parent=11 // pred_region
          _
        $region40: #{tpu_custom_call.1} parent=11 // pred_fallthru
          _
        // Predicated region
        $region41: #{tpu_custom_call.1} parent=11 // pred_check
          %p431 = pneg %p327
        $region42: #{tpu_custom_call.1} parent=11 // pred_check_branch
          %433 = sbr.rel (%p431) target = $region44
        $region43: #{tpu_custom_call.1} parent=11 // pred_region
          _
        $region44: #{tpu_custom_call.1} parent=11 // pred_fallthru
          _
        // Predicated region
        $region45: #{tpu_custom_call.1} parent=11 // pred_check
          %p434 = pneg %p348
        $region46: #{tpu_custom_call.1} parent=11 // pred_check_branch
          %436 = sbr.rel (%p434) target = $region48
        $region47: #{tpu_custom_call.1} parent=11 // pred_region
          _
        $region48: #{tpu_custom_call.1} parent=11 // pred_fallthru
          _
        // Predicated region
        $region49: #{tpu_custom_call.1} parent=11 // pred_check
          %p437 = pneg %p369
        $region50: #{tpu_custom_call.1} parent=11 // pred_check_branch
          %439 = sbr.rel (%p437) target = $region52
        $region51: #{tpu_custom_call.1} parent=11 // pred_region
          _
        $region52: #{tpu_custom_call.1} parent=11 // pred_fallthru
          _
      $region12: #{tpu_custom_call.1} parent=5 // pred_fallthru
        _
      %p440 = scmp.lt.s32.totalorder %s37, 9
      // Predicated region
      $region53: #{tpu_custom_call.1} parent=5 // pred_check
        %p441 = pneg %p440
      $region54: #{tpu_custom_call.1} parent=5 // pred_check_branch
        %443 = sbr.rel (%p441) target = $region56
      $region55: #{tpu_custom_call.1} parent=5 // pred_region
        // Predicated region
        $region57: #{tpu_custom_call.1} parent=55 // pred_check
          %p444 = pneg %p85
        $region58: #{tpu_custom_call.1} parent=55 // pred_check_branch
          %446 = sbr.rel (%p444) target = $region60
        $region59: #{tpu_custom_call.1} parent=55 // pred_region
          %s447 = sld [smem:[#allocation4 + %s44]]
          %s448 = sld [smem:[#allocation5 + %s44]]
          %s449 = ssub.s32 %s448, 1
          %p450 = scmp.gt.s32.totalorder %s449, 0
          %s451 = scalar_select %p450, %s449, 0
          %p452 = scmp.lt.s32.totalorder %s45, %s451
          %s453 = scalar_select %p452, %s45, %s451
          %s454 = sadd.s32 %s447, %s453
          %s455 = smul.u32 4, %s454
          %p456 = scmp.lt.s32.totalorder %s455, 11
          %s457 = scalar_select %p456, %s455, 11
          %s458 = scalar_lea.vmem %s2, %s457
          %s459 = sld [smem:[#allocation4 + %s44]]
          %s460 = sld [smem:[#allocation5 + %s44]]
          %s461 = ssub.s32 %s460, 1
          %p462 = scmp.gt.s32.totalorder %s461, 0
          %s463 = scalar_select %p462, %s461, 0
          %p464 = scmp.lt.s32.totalorder %s45, %s463
          %s465 = scalar_select %p464, %s45, %s463
          %s466 = sadd.s32 %s459, %s465
          %s467 = smul.u32 4, %s466
        $region60: #{tpu_custom_call.1} parent=55 // pred_fallthru
          _
        // Predicated region
        $region61: #{tpu_custom_call.1} parent=55 // pred_check
          %p468 = pneg %p127
        $region62: #{tpu_custom_call.1} parent=55 // pred_check_branch
          %470 = sbr.rel (%p468) target = $region64
        $region63: #{tpu_custom_call.1} parent=55 // pred_region
          %s471 = sld [smem:[#allocation4 + %s44]]
          %s472 = sld [smem:[#allocation5 + %s44]]
          %s473 = ssub.s32 %s472, 1
          %p474 = scmp.gt.s32.totalorder %s473, 0
          %s475 = scalar_select %p474, %s473, 0
          %p476 = scmp.lt.s32.totalorder %s45, %s475
          %s477 = scalar_select %p476, %s45, %s475
          %s478 = sadd.s32 %s471, %s477
          %s479 = smul.u32 64, %s478
          %p480 = scmp.lt.s32.totalorder %s479, 191
          %s481 = scalar_select %p480, %s479, 191
          %s482 = smul.addr %s481, 8
          %s483 = scalar_lea.vmem %s3, %s482
          %s484 = sld [smem:[#allocation4 + %s44]]
          %s485 = sld [smem:[#allocation5 + %s44]]
          %s486 = ssub.s32 %s485, 1
          %p487 = scmp.gt.s32.totalorder %s486, 0
          %s488 = scalar_select %p487, %s486, 0
          %p489 = scmp.lt.s32.totalorder %s45, %s488
          %s490 = scalar_select %p489, %s45, %s488
          %s491 = sadd.s32 %s484, %s490
          %s492 = smul.u32 64, %s491
        $region64: #{tpu_custom_call.1} parent=55 // pred_fallthru
          _
        // Predicated region
        $region65: #{tpu_custom_call.1} parent=55 // pred_check
          %p493 = pneg %p153
        $region66: #{tpu_custom_call.1} parent=55 // pred_check_branch
          %495 = sbr.rel (%p493) target = $region68
        $region67: #{tpu_custom_call.1} parent=55 // pred_region
          %s496 = smul.u32 16, %s44
          %p497 = scmp.lt.s32.totalorder %s496, 47
          %s498 = scalar_select %p497, %s496, 47
          %s499 = smul.addr %s498, 8
          %s500 = scalar_lea.vmem %s4, %s499
          %s501 = smul.u32 16, %s44
        $region68: #{tpu_custom_call.1} parent=55 // pred_fallthru
          _
      $region56: #{tpu_custom_call.1} parent=5 // pred_fallthru
        _
      %p502 = scmp.le.s32.totalorder 1, %s37
      %p503 = scmp.lt.s32.totalorder %s37, 10
      %p504 = pnand %p502, %p503
      %p505 = pneg %p504
      // Predicated region
      $region69: #{tpu_custom_call.1} parent=5 // pred_check
        _
      $region70: #{tpu_custom_call.1} parent=5 // pred_check_branch
        %507 = sbr.rel (%p504) target = $region72
      $region71: #{tpu_custom_call.1} parent=5 // pred_region
        %s508 = ssub.s32 %s37, 1
        %s509 = sld [smem:[#allocation4 + %s46]]
        %s510 = sld [smem:[#allocation5 + %s46]]
        %s511 = ssub.s32 %s510, 1
        %p512 = scmp.gt.s32.totalorder %s511, 0
        %s513 = scalar_select %p512, %s511, 0
        %p514 = scmp.lt.s32.totalorder %s47, %s513
        %s515 = scalar_select %p514, %s47, %s513
        %s516 = sadd.s32 %s509, %s515
        %s517 = smul.u32 4, %s516
        %p518 = scmp.lt.s32.totalorder %s517, 11
        %s519 = scalar_select %p518, %s517, 11
        %s520 = scalar_lea.vmem %s2, %s519
        %p521 = pneg %p91
        %p522 = pneg %p88
        %s523 = sld [smem:[#allocation4 + %s46]]
        %s524 = sld [smem:[#allocation5 + %s46]]
        %s525 = ssub.s32 %s524, 1
        %p526 = scmp.gt.s32.totalorder %s525, 0
        %s527 = scalar_select %p526, %s525, 0
        %p528 = scmp.lt.s32.totalorder %s47, %s527
        %s529 = scalar_select %p528, %s47, %s527
        %s530 = sadd.s32 %s523, %s529
        %s531 = smul.u32 64, %s530
        %p532 = scmp.lt.s32.totalorder %s531, 191
        %s533 = scalar_select %p532, %s531, 191
        %s534 = smul.addr %s533, 8
        %s535 = scalar_lea.vmem %s3, %s534
        %p536 = pneg %p133
        %p537 = pneg %p130
        %s538 = smul.u32 16, %s46
        %p539 = scmp.lt.s32.totalorder %s538, 47
        %s540 = scalar_select %p539, %s538, 47
        %s541 = smul.addr %s540, 8
        %s542 = scalar_lea.vmem %s4, %s541
        %p543 = pneg %p159
        %p544 = pneg %p156
        %p545 = pneg %p180
        %p546 = pneg %p177
        %p547 = pneg %p201
        %p548 = pneg %p198
        %p549 = pneg %p222
        %p550 = pneg %p219
        %p551 = pneg %p243
        %p552 = pneg %p240
        %p553 = pneg %p264
        %p554 = pneg %p261
        %p555 = pneg %p285
        %p556 = pneg %p282
        %p557 = pneg %p306
        %p558 = pneg %p303
        %p559 = pneg %p327
        %p560 = pneg %p324
        %p561 = pneg %p348
        %p562 = pneg %p345
        %p563 = pneg %p369
        %p564 = pneg %p366
        %p565 = pneg %p395
        %p566 = pneg %p392
        %s567 = sand.u32 %s382, 1
        %s568 = scalar_lea.sflag [#allocation7], %s567
        %s569 = sand.u32 %s382, 1
        %s570 = smul.addr %s569, 128
        %s571 = scalar_lea.vmem [#allocation6], %s570
        %s572 = sld [smem:[#allocation4 + %s46]]
        %s573 = sld [smem:[#allocation5 + %s46]]
        %s574 = ssub.s32 %s573, 1
        %p575 = scmp.gt.s32.totalorder %s574, 0
        %s576 = scalar_select %p575, %s574, 0
        %p577 = scmp.lt.s32.totalorder %s47, %s576
        %s578 = scalar_select %p577, %s47, %s576
        %s579 = sadd.s32 %s572, %s578
        %s580 = smul.u32 4, %s579
        %p581 = scmp.lt.s32.totalorder %s580, 11
        %s582 = scalar_select %p581, %s580, 11
        %s583 = scalar_lea.vmem %s2, %s582
        %s584 = sld [smem:[#allocation4 + %s46]]
        %s585 = sld [smem:[#allocation5 + %s46]]
        %s586 = ssub.s32 %s585, 1
        %p587 = scmp.gt.s32.totalorder %s586, 0
        %s588 = scalar_select %p587, %s586, 0
        %p589 = scmp.lt.s32.totalorder %s47, %s588
        %s590 = scalar_select %p589, %s47, %s588
        %s591 = sadd.s32 %s584, %s590
        %s592 = smul.u32 4, %s591
        %s593 = sld [smem:[#allocation4 + %s46]]
        %s594 = sld [smem:[#allocation5 + %s46]]
        %s595 = ssub.s32 %s594, 1
        %p596 = scmp.gt.s32.totalorder %s595, 0
        %s597 = scalar_select %p596, %s595, 0
        %p598 = scmp.lt.s32.totalorder %s47, %s597
        %s599 = scalar_select %p598, %s47, %s597
        %s600 = sadd.s32 %s593, %s599
        %s601 = smul.u32 64, %s600
        %p602 = scmp.lt.s32.totalorder %s601, 191
        %s603 = scalar_select %p602, %s601, 191
        %s604 = smul.addr %s603, 8
        %s605 = scalar_lea.vmem %s3, %s604
        %s606 = sld [smem:[#allocation4 + %s46]]
        %s607 = sld [smem:[#allocation5 + %s46]]
        %s608 = ssub.s32 %s607, 1
        %p609 = scmp.gt.s32.totalorder %s608, 0
        %s610 = scalar_select %p609, %s608, 0
        %p611 = scmp.lt.s32.totalorder %s47, %s610
        %s612 = scalar_select %p611, %s47, %s610
        %s613 = sadd.s32 %s606, %s612
        %s614 = smul.u32 64, %s613
        %s615 = smul.u32 16, %s46
        %p616 = scmp.lt.s32.totalorder %s615, 47
        %s617 = scalar_select %p616, %s615, 47
        %s618 = smul.addr %s617, 8
        %s619 = scalar_lea.vmem %s4, %s618
        %s620 = smul.u32 16, %s46
        %s621 = smul.u32 16, %s46
        %p622 = scmp.eq.s32.totalorder %s47, 0
        // Predicated region
        $region73: #{tpu_custom_call.1} parent=71 // pred_check
          %p623 = pneg %p622
        $region74: #{tpu_custom_call.1} parent=71 // pred_check_branch
          %625 = sbr.rel (%p623) target = $region76
        $region75: #{tpu_custom_call.1} parent=71 // pred_region
          %vm626 = vcmask 195584
          %627 = vst.msk [vmem:[#allocation2] sm:$0xff] %vm626, 0.0
          %628 = vst.msk [vmem:[#allocation2 + $0x8] sm:$0xff] %vm626, 0.0
          %629 = vst.msk [vmem:[#allocation2 + $0x10] sm:$0xff] %vm626, 0.0
          %630 = vst.msk [vmem:[#allocation2 + $0x18] sm:$0xff] %vm626, 0.0
          %631 = vst.msk [vmem:[#allocation2 + $0x20] sm:$0xff] %vm626, 0.0
          %632 = vst.msk [vmem:[#allocation2 + $0x28] sm:$0xff] %vm626, 0.0
          %633 = vst.msk [vmem:[#allocation2 + $0x30] sm:$0xff] %vm626, 0.0
          %634 = vst.msk [vmem:[#allocation2 + $0x38] sm:$0xff] %vm626, 0.0
          %635 = vst.msk [vmem:[#allocation2 + $0x40] sm:$0xff] %vm626, 0.0
          %636 = vst.msk [vmem:[#allocation2 + $0x48] sm:$0xff] %vm626, 0.0
          %637 = vst.msk [vmem:[#allocation2 + $0x50] sm:$0xff] %vm626, 0.0
          %638 = vst.msk [vmem:[#allocation2 + $0x58] sm:$0xff] %vm626, 0.0
          %639 = vst.msk [vmem:[#allocation2 + $0x60] sm:$0xff] %vm626, 0.0
          %640 = vst.msk [vmem:[#allocation2 + $0x68] sm:$0xff] %vm626, 0.0
          %641 = vst.msk [vmem:[#allocation2 + $0x70] sm:$0xff] %vm626, 0.0
          %642 = vst.msk [vmem:[#allocation2 + $0x78] sm:$0xff] %vm626, 0.0
        $region76: #{tpu_custom_call.1} parent=71 // pred_fallthru
          _
        %s643 = sld [smem:[#allocation5 + %s46]]
        %p644 = scmp.lt.s32.totalorder %s47, %s643
        // Predicated region
        $region77: #{tpu_custom_call.1} parent=71 // pred_check
          %p645 = pneg %p644
        $region78: #{tpu_custom_call.1} parent=71 // pred_check_branch
          %647 = sbr.rel (%p645) target = $region80
        $region79: #{tpu_custom_call.1} parent=71 // pred_region
          %v648 = vlaneseq
          %v649 = vshrl.u32 %v648, 7
          %v650 = vadd.s32 %v649, 8
          %v651 = vadd.s32 %v649, 16
          %v652 = vadd.s32 %v649, 24
          %v653 = vadd.s32 %v649, 32
          %v654 = vadd.s32 %v649, 40
          %v655 = vadd.s32 %v649, 48
          %v656 = vadd.s32 %v649, 56
          %v657 = vadd.s32 %v649, 64
          %v658 = vadd.s32 %v649, 72
          %v659 = vadd.s32 %v649, 80
          %v660 = vadd.s32 %v649, 88
          %v661 = vadd.s32 %v649, 96
          %v662 = vadd.s32 %v649, 104
          %v663 = vadd.s32 %v649, 112
          %v664 = vadd.s32 %v649, 120
          %s665 = smul.u32 %s46, 128
          %v666 = vstv %s665
          %v667 = vadd.s32 %v649, %v666
          %v668 = vadd.s32 %v650, %v666
          %v669 = vadd.s32 %v651, %v666
          %v670 = vadd.s32 %v652, %v666
          %v671 = vadd.s32 %v653, %v666
          %v672 = vadd.s32 %v654, %v666
          %v673 = vadd.s32 %v655, %v666
          %v674 = vadd.s32 %v656, %v666
          %v675 = vadd.s32 %v657, %v666
          %v676 = vadd.s32 %v658, %v666
          %v677 = vadd.s32 %v659, %v666
          %v678 = vadd.s32 %v660, %v666
          %v679 = vadd.s32 %v661, %v666
          %v680 = vadd.s32 %v662, %v666
          %v681 = vadd.s32 %v663, %v666
          %v682 = vadd.s32 %v664, %v666
          %v683 = vld [vmem:[%s583] sm:$0xf]
          %v684 = vperm.slane %v683, 0
          %v685 = vperm.slane %v683, 1
          %v686 = vperm.slane %v683, 2
          %v687 = vperm.slane %v683, 3
          %vm688 = vcmp.eq.s32.totalorder %v667, %v684
          %vm689 = vcmp.eq.s32.totalorder %v667, %v685
          %vm690 = vcmp.eq.s32.totalorder %v667, %v686
          %vm691 = vcmp.eq.s32.totalorder %v667, %v687
          %vm692 = vcmp.eq.s32.totalorder %v668, %v684
          %vm693 = vcmp.eq.s32.totalorder %v668, %v685
          %vm694 = vcmp.eq.s32.totalorder %v668, %v686
          %vm695 = vcmp.eq.s32.totalorder %v668, %v687
          %vm696 = vcmp.eq.s32.totalorder %v669, %v684
          %vm697 = vcmp.eq.s32.totalorder %v669, %v685
          %vm698 = vcmp.eq.s32.totalorder %v669, %v686
          %vm699 = vcmp.eq.s32.totalorder %v669, %v687
          %vm700 = vcmp.eq.s32.totalorder %v670, %v684
          %vm701 = vcmp.eq.s32.totalorder %v670, %v685
          %vm702 = vcmp.eq.s32.totalorder %v670, %v686
          %vm703 = vcmp.eq.s32.totalorder %v670, %v687
          %vm704 = vcmp.eq.s32.totalorder %v671, %v684
          %vm705 = vcmp.eq.s32.totalorder %v671, %v685
          %vm706 = vcmp.eq.s32.totalorder %v671, %v686
          %vm707 = vcmp.eq.s32.totalorder %v671, %v687
          %vm708 = vcmp.eq.s32.totalorder %v672, %v684
          %vm709 = vcmp.eq.s32.totalorder %v672, %v685
          %vm710 = vcmp.eq.s32.totalorder %v672, %v686
          %vm711 = vcmp.eq.s32.totalorder %v672, %v687
          %vm712 = vcmp.eq.s32.totalorder %v673, %v684
          %vm713 = vcmp.eq.s32.totalorder %v673, %v685
          %vm714 = vcmp.eq.s32.totalorder %v673, %v686
          %vm715 = vcmp.eq.s32.totalorder %v673, %v687
          %vm716 = vcmp.eq.s32.totalorder %v674, %v684
          %vm717 = vcmp.eq.s32.totalorder %v674, %v685
          %vm718 = vcmp.eq.s32.totalorder %v674, %v686
          %vm719 = vcmp.eq.s32.totalorder %v674, %v687
          %vm720 = vcmp.eq.s32.totalorder %v675, %v684
          %vm721 = vcmp.eq.s32.totalorder %v675, %v685
          %vm722 = vcmp.eq.s32.totalorder %v675, %v686
          %vm723 = vcmp.eq.s32.totalorder %v675, %v687
          %vm724 = vcmp.eq.s32.totalorder %v676, %v684
          %vm725 = vcmp.eq.s32.totalorder %v676, %v685
          %vm726 = vcmp.eq.s32.totalorder %v676, %v686
          %vm727 = vcmp.eq.s32.totalorder %v676, %v687
          %vm728 = vcmp.eq.s32.totalorder %v677, %v684
          %vm729 = vcmp.eq.s32.totalorder %v677, %v685
          %vm730 = vcmp.eq.s32.totalorder %v677, %v686
          %vm731 = vcmp.eq.s32.totalorder %v677, %v687
          %vm732 = vcmp.eq.s32.totalorder %v678, %v684
          %vm733 = vcmp.eq.s32.totalorder %v678, %v685
          %vm734 = vcmp.eq.s32.totalorder %v678, %v686
          %vm735 = vcmp.eq.s32.totalorder %v678, %v687
          %vm736 = vcmp.eq.s32.totalorder %v679, %v684
          %vm737 = vcmp.eq.s32.totalorder %v679, %v685
          %vm738 = vcmp.eq.s32.totalorder %v679, %v686
          %vm739 = vcmp.eq.s32.totalorder %v679, %v687
          %vm740 = vcmp.eq.s32.totalorder %v680, %v684
          %vm741 = vcmp.eq.s32.totalorder %v680, %v685
          %vm742 = vcmp.eq.s32.totalorder %v680, %v686
          %vm743 = vcmp.eq.s32.totalorder %v680, %v687
          %vm744 = vcmp.eq.s32.totalorder %v681, %v684
          %vm745 = vcmp.eq.s32.totalorder %v681, %v685
          %vm746 = vcmp.eq.s32.totalorder %v681, %v686
          %vm747 = vcmp.eq.s32.totalorder %v681, %v687
          %vm748 = vcmp.eq.s32.totalorder %v682, %v684
          %vm749 = vcmp.eq.s32.totalorder %v682, %v685
          %vm750 = vcmp.eq.s32.totalorder %v682, %v686
          %vm751 = vcmp.eq.s32.totalorder %v682, %v687
          %v752 = vsel %vm688, 1.0, 0.0
          %v753 = vsel %vm689, 1.0, 0.0
          %v754 = vsel %vm690, 1.0, 0.0
          %v755 = vsel %vm691, 1.0, 0.0
          %v756 = vsel %vm692, 1.0, 0.0
          %v757 = vsel %vm693, 1.0, 0.0
          %v758 = vsel %vm694, 1.0, 0.0
          %v759 = vsel %vm695, 1.0, 0.0
          %v760 = vsel %vm696, 1.0, 0.0
          %v761 = vsel %vm697, 1.0, 0.0
          %v762 = vsel %vm698, 1.0, 0.0
          %v763 = vsel %vm699, 1.0, 0.0
          %v764 = vsel %vm700, 1.0, 0.0
          %v765 = vsel %vm701, 1.0, 0.0
          %v766 = vsel %vm702, 1.0, 0.0
          %v767 = vsel %vm703, 1.0, 0.0
          %v768 = vsel %vm704, 1.0, 0.0
          %v769 = vsel %vm705, 1.0, 0.0
          %v770 = vsel %vm706, 1.0, 0.0
          %v771 = vsel %vm707, 1.0, 0.0
          %v772 = vsel %vm708, 1.0, 0.0
          %v773 = vsel %vm709, 1.0, 0.0
          %v774 = vsel %vm710, 1.0, 0.0
          %v775 = vsel %vm711, 1.0, 0.0
          %v776 = vsel %vm712, 1.0, 0.0
          %v777 = vsel %vm713, 1.0, 0.0
          %v778 = vsel %vm714, 1.0, 0.0
          %v779 = vsel %vm715, 1.0, 0.0
          %v780 = vsel %vm716, 1.0, 0.0
          %v781 = vsel %vm717, 1.0, 0.0
          %v782 = vsel %vm718, 1.0, 0.0
          %v783 = vsel %vm719, 1.0, 0.0
          %v784 = vsel %vm720, 1.0, 0.0
          %v785 = vsel %vm721, 1.0, 0.0
          %v786 = vsel %vm722, 1.0, 0.0
          %v787 = vsel %vm723, 1.0, 0.0
          %v788 = vsel %vm724, 1.0, 0.0
          %v789 = vsel %vm725, 1.0, 0.0
          %v790 = vsel %vm726, 1.0, 0.0
          %v791 = vsel %vm727, 1.0, 0.0
          %v792 = vsel %vm728, 1.0, 0.0
          %v793 = vsel %vm729, 1.0, 0.0
          %v794 = vsel %vm730, 1.0, 0.0
          %v795 = vsel %vm731, 1.0, 0.0
          %v796 = vsel %vm732, 1.0, 0.0
          %v797 = vsel %vm733, 1.0, 0.0
          %v798 = vsel %vm734, 1.0, 0.0
          %v799 = vsel %vm735, 1.0, 0.0
          %v800 = vsel %vm736, 1.0, 0.0
          %v801 = vsel %vm737, 1.0, 0.0
          %v802 = vsel %vm738, 1.0, 0.0
          %v803 = vsel %vm739, 1.0, 0.0
          %v804 = vsel %vm740, 1.0, 0.0
          %v805 = vsel %vm741, 1.0, 0.0
          %v806 = vsel %vm742, 1.0, 0.0
          %v807 = vsel %vm743, 1.0, 0.0
          %v808 = vsel %vm744, 1.0, 0.0
          %v809 = vsel %vm745, 1.0, 0.0
          %v810 = vsel %vm746, 1.0, 0.0
          %v811 = vsel %vm747, 1.0, 0.0
          %v812 = vsel %vm748, 1.0, 0.0
          %v813 = vsel %vm749, 1.0, 0.0
          %v814 = vsel %vm750, 1.0, 0.0
          %v815 = vsel %vm751, 1.0, 0.0
          %v816 = vld [vmem:[#allocation2] sm:$0xff]
          %v817 = vld [vmem:[#allocation2 + $0x8] sm:$0xff]
          %v818 = vld [vmem:[#allocation2 + $0x10] sm:$0xff]
          %v819 = vld [vmem:[#allocation2 + $0x18] sm:$0xff]
          %v820 = vld [vmem:[#allocation2 + $0x20] sm:$0xff]
          %v821 = vld [vmem:[#allocation2 + $0x28] sm:$0xff]
          %v822 = vld [vmem:[#allocation2 + $0x30] sm:$0xff]
          %v823 = vld [vmem:[#allocation2 + $0x38] sm:$0xff]
          %v824 = vld [vmem:[#allocation2 + $0x40] sm:$0xff]
          %v825 = vld [vmem:[#allocation2 + $0x48] sm:$0xff]
          %v826 = vld [vmem:[#allocation2 + $0x50] sm:$0xff]
          %v827 = vld [vmem:[#allocation2 + $0x58] sm:$0xff]
          %v828 = vld [vmem:[#allocation2 + $0x60] sm:$0xff]
          %v829 = vld [vmem:[#allocation2 + $0x68] sm:$0xff]
          %v830 = vld [vmem:[#allocation2 + $0x70] sm:$0xff]
          %v831 = vld [vmem:[#allocation2 + $0x78] sm:$0xff]
          %v832 = vld [vmem:[%s605] sm:$0xff]
          %v833 = vld [vmem:[%s605 + $0x8] sm:$0xff]
          %v834 = vld [vmem:[%s605 + $0x10] sm:$0xff]
          %v835 = vld [vmem:[%s605 + $0x18] sm:$0xff]
          %v836 = vld [vmem:[%s605 + $0x20] sm:$0xff]
          %v837 = vld [vmem:[%s605 + $0x28] sm:$0xff]
          %v838 = vld [vmem:[%s605 + $0x30] sm:$0xff]
          %v839 = vld [vmem:[%s605 + $0x38] sm:$0xff]
          %v840 = vld [vmem:[%s605 + $0x40] sm:$0xff]
          %v841 = vld [vmem:[%s605 + $0x48] sm:$0xff]
          %v842 = vld [vmem:[%s605 + $0x50] sm:$0xff]
          %v843 = vld [vmem:[%s605 + $0x58] sm:$0xff]
          %v844 = vld [vmem:[%s605 + $0x60] sm:$0xff]
          %v845 = vld [vmem:[%s605 + $0x68] sm:$0xff]
          %v846 = vld [vmem:[%s605 + $0x70] sm:$0xff]
          %v847 = vld [vmem:[%s605 + $0x78] sm:$0xff]
          %v848 = vld [vmem:[%s605 + $0x80] sm:$0xff]
          %v849 = vld [vmem:[%s605 + $0x88] sm:$0xff]
          %v850 = vld [vmem:[%s605 + $0x90] sm:$0xff]
          %v851 = vld [vmem:[%s605 + $0x98] sm:$0xff]
          %v852 = vld [vmem:[%s605 + $0xa0] sm:$0xff]
          %v853 = vld [vmem:[%s605 + $0xa8] sm:$0xff]
          %v854 = vld [vmem:[%s605 + $0xb0] sm:$0xff]
          %v855 = vld [vmem:[%s605 + $0xb8] sm:$0xff]
          %v856 = vld [vmem:[%s605 + $0xc0] sm:$0xff]
          %v857 = vld [vmem:[%s605 + $0xc8] sm:$0xff]
          %v858 = vld [vmem:[%s605 + $0xd0] sm:$0xff]
          %v859 = vld [vmem:[%s605 + $0xd8] sm:$0xff]
          %v860 = vld [vmem:[%s605 + $0xe0] sm:$0xff]
          %v861 = vld [vmem:[%s605 + $0xe8] sm:$0xff]
          %v862 = vld [vmem:[%s605 + $0xf0] sm:$0xff]
          %v863 = vld [vmem:[%s605 + $0xf8] sm:$0xff]
          %v864 = vld [vmem:[%s605 + $0x100] sm:$0xff]
          %v865 = vld [vmem:[%s605 + $0x108] sm:$0xff]
          %v866 = vld [vmem:[%s605 + $0x110] sm:$0xff]
          %v867 = vld [vmem:[%s605 + $0x118] sm:$0xff]
          %v868 = vld [vmem:[%s605 + $0x120] sm:$0xff]
          %v869 = vld [vmem:[%s605 + $0x128] sm:$0xff]
          %v870 = vld [vmem:[%s605 + $0x130] sm:$0xff]
          %v871 = vld [vmem:[%s605 + $0x138] sm:$0xff]
          %v872 = vld [vmem:[%s605 + $0x140] sm:$0xff]
          %v873 = vld [vmem:[%s605 + $0x148] sm:$0xff]
          %v874 = vld [vmem:[%s605 + $0x150] sm:$0xff]
          %v875 = vld [vmem:[%s605 + $0x158] sm:$0xff]
          %v876 = vld [vmem:[%s605 + $0x160] sm:$0xff]
          %v877 = vld [vmem:[%s605 + $0x168] sm:$0xff]
          %v878 = vld [vmem:[%s605 + $0x170] sm:$0xff]
          %v879 = vld [vmem:[%s605 + $0x178] sm:$0xff]
          %v880 = vld [vmem:[%s605 + $0x180] sm:$0xff]
          %v881 = vld [vmem:[%s605 + $0x188] sm:$0xff]
          %v882 = vld [vmem:[%s605 + $0x190] sm:$0xff]
          %v883 = vld [vmem:[%s605 + $0x198] sm:$0xff]
          %v884 = vld [vmem:[%s605 + $0x1a0] sm:$0xff]
          %v885 = vld [vmem:[%s605 + $0x1a8] sm:$0xff]
          %v886 = vld [vmem:[%s605 + $0x1b0] sm:$0xff]
          %v887 = vld [vmem:[%s605 + $0x1b8] sm:$0xff]
          %v888 = vld [vmem:[%s605 + $0x1c0] sm:$0xff]
          %v889 = vld [vmem:[%s605 + $0x1c8] sm:$0xff]
          %v890 = vld [vmem:[%s605 + $0x1d0] sm:$0xff]
          %v891 = vld [vmem:[%s605 + $0x1d8] sm:$0xff]
          %v892 = vld [vmem:[%s605 + $0x1e0] sm:$0xff]
          %v893 = vld [vmem:[%s605 + $0x1e8] sm:$0xff]
          %v894 = vld [vmem:[%s605 + $0x1f0] sm:$0xff]
          %v895 = vld [vmem:[%s605 + $0x1f8] sm:$0xff]
          %896 = vmatpush.msra.mxu0 %v847
          %897 = vmatpush.msra.mxu0 %v846
          %898 = vmatpush.msra.mxu0 %v845
          %899 = vmatpush.msra.mxu0 %v844
          %900 = vmatpush.msra.mxu0 %v843
          %901 = vmatpush.msra.mxu0 %v842
          %902 = vmatpush.msra.mxu0 %v841
          %903 = vmatpush.msra.mxu0 %v840
          %904 = vmatpush.msra.mxu0 %v839
          %905 = vmatpush.msra.mxu0 %v838
          %906 = vmatpush.msra.mxu0 %v837
          %907 = vmatpush.msra.mxu0 %v836
          %908 = vmatpush.msra.mxu0 %v835
          %909 = vmatpush.msra.mxu0 %v834
          %910 = vmatpush.msra.mxu0 %v833
          %911 = vmatpush.msra.mxu0 %v832
          %912 = vmatmul.f32.gmra.mxu0 %v752
          %v913 = vpop.f32.mrf.mxu0
          %v914 = vadd.f32 0.0, %v913
          %915 = vmatmul.f32.gmra.mxu0 %v756
          %v916 = vpop.f32.mrf.mxu0
          %v917 = vadd.f32 0.0, %v916
          %918 = vmatmul.f32.gmra.mxu0 %v760
          %v919 = vpop.f32.mrf.mxu0
          %v920 = vadd.f32 0.0, %v919
          %921 = vmatmul.f32.gmra.mxu0 %v764
          %v922 = vpop.f32.mrf.mxu0
          %v923 = vadd.f32 0.0, %v922
          %924 = vmatmul.f32.gmra.mxu0 %v768
          %v925 = vpop.f32.mrf.mxu0
          %v926 = vadd.f32 0.0, %v925
          %927 = vmatmul.f32.gmra.mxu0 %v772
          %v928 = vpop.f32.mrf.mxu0
          %v929 = vadd.f32 0.0, %v928
          %930 = vmatmul.f32.gmra.mxu0 %v776
          %v931 = vpop.f32.mrf.mxu0
          %v932 = vadd.f32 0.0, %v931
          %933 = vmatmul.f32.gmra.mxu0 %v780
          %v934 = vpop.f32.mrf.mxu0
          %v935 = vadd.f32 0.0, %v934
          %936 = vmatmul.f32.gmra.mxu0 %v784
          %v937 = vpop.f32.mrf.mxu0
          %v938 = vadd.f32 0.0, %v937
          %939 = vmatmul.f32.gmra.mxu0 %v788
          %v940 = vpop.f32.mrf.mxu0
          %v941 = vadd.f32 0.0, %v940
          %942 = vmatmul.f32.gmra.mxu0 %v792
          %v943 = vpop.f32.mrf.mxu0
          %v944 = vadd.f32 0.0, %v943
          %945 = vmatmul.f32.gmra.mxu0 %v796
          %v946 = vpop.f32.mrf.mxu0
          %v947 = vadd.f32 0.0, %v946
          %948 = vmatmul.f32.gmra.mxu0 %v800
          %v949 = vpop.f32.mrf.mxu0
          %v950 = vadd.f32 0.0, %v949
          %951 = vmatmul.f32.gmra.mxu0 %v804
          %v952 = vpop.f32.mrf.mxu0
          %v953 = vadd.f32 0.0, %v952
          %954 = vmatmul.f32.gmra.mxu0 %v808
          %v955 = vpop.f32.mrf.mxu0
          %v956 = vadd.f32 0.0, %v955
          %957 = vmatmul.f32.gmra.mxu0 %v812
          %v958 = vpop.f32.mrf.mxu0
          %v959 = vadd.f32 0.0, %v958
          %960 = vdwg.mxu0
          %961 = vmatpush.msra.mxu0 %v863
          %962 = vmatpush.msra.mxu0 %v862
          %963 = vmatpush.msra.mxu0 %v861
          %964 = vmatpush.msra.mxu0 %v860
          %965 = vmatpush.msra.mxu0 %v859
          %966 = vmatpush.msra.mxu0 %v858
          %967 = vmatpush.msra.mxu0 %v857
          %968 = vmatpush.msra.mxu0 %v856
          %969 = vmatpush.msra.mxu0 %v855
          %970 = vmatpush.msra.mxu0 %v854
          %971 = vmatpush.msra.mxu0 %v853
          %972 = vmatpush.msra.mxu0 %v852
          %973 = vmatpush.msra.mxu0 %v851
          %974 = vmatpush.msra.mxu0 %v850
          %975 = vmatpush.msra.mxu0 %v849
          %976 = vmatpush.msra.mxu0 %v848
          %977 = vmatmul.f32.gmra.mxu0 %v753
          %v978 = vpop.f32.mrf.mxu0
          %v979 = vadd.f32 %v914, %v978
          %980 = vmatmul.f32.gmra.mxu0 %v757
          %v981 = vpop.f32.mrf.mxu0
          %v982 = vadd.f32 %v917, %v981
          %983 = vmatmul.f32.gmra.mxu0 %v761
          %v984 = vpop.f32.mrf.mxu0
          %v985 = vadd.f32 %v920, %v984
          %986 = vmatmul.f32.gmra.mxu0 %v765
          %v987 = vpop.f32.mrf.mxu0
          %v988 = vadd.f32 %v923, %v987
          %989 = vmatmul.f32.gmra.mxu0 %v769
          %v990 = vpop.f32.mrf.mxu0
          %v991 = vadd.f32 %v926, %v990
          %992 = vmatmul.f32.gmra.mxu0 %v773
          %v993 = vpop.f32.mrf.mxu0
          %v994 = vadd.f32 %v929, %v993
          %995 = vmatmul.f32.gmra.mxu0 %v777
          %v996 = vpop.f32.mrf.mxu0
          %v997 = vadd.f32 %v932, %v996
          %998 = vmatmul.f32.gmra.mxu0 %v781
          %v999 = vpop.f32.mrf.mxu0
          %v1000 = vadd.f32 %v935, %v999
          %1001 = vmatmul.f32.gmra.mxu0 %v785
          %v1002 = vpop.f32.mrf.mxu0
          %v1003 = vadd.f32 %v938, %v1002
          %1004 = vmatmul.f32.gmra.mxu0 %v789
          %v1005 = vpop.f32.mrf.mxu0
          %v1006 = vadd.f32 %v941, %v1005
          %1007 = vmatmul.f32.gmra.mxu0 %v793
          %v1008 = vpop.f32.mrf.mxu0
          %v1009 = vadd.f32 %v944, %v1008
          %1010 = vmatmul.f32.gmra.mxu0 %v797
          %v1011 = vpop.f32.mrf.mxu0
          %v1012 = vadd.f32 %v947, %v1011
          %1013 = vmatmul.f32.gmra.mxu0 %v801
          %v1014 = vpop.f32.mrf.mxu0
          %v1015 = vadd.f32 %v950, %v1014
          %1016 = vmatmul.f32.gmra.mxu0 %v805
          %v1017 = vpop.f32.mrf.mxu0
          %v1018 = vadd.f32 %v953, %v1017
          %1019 = vmatmul.f32.gmra.mxu0 %v809
          %v1020 = vpop.f32.mrf.mxu0
          %v1021 = vadd.f32 %v956, %v1020
          %1022 = vmatmul.f32.gmra.mxu0 %v813
          %v1023 = vpop.f32.mrf.mxu0
          %v1024 = vadd.f32 %v959, %v1023
          %1025 = vdwg.mxu0
          %1026 = vmatpush.msra.mxu0 %v879
          %1027 = vmatpush.msra.mxu0 %v878
          %1028 = vmatpush.msra.mxu0 %v877
          %1029 = vmatpush.msra.mxu0 %v876
          %1030 = vmatpush.msra.mxu0 %v875
          %1031 = vmatpush.msra.mxu0 %v874
          %1032 = vmatpush.msra.mxu0 %v873
          %1033 = vmatpush.msra.mxu0 %v872
          %1034 = vmatpush.msra.mxu0 %v871
          %1035 = vmatpush.msra.mxu0 %v870
          %1036 = vmatpush.msra.mxu0 %v869
          %1037 = vmatpush.msra.mxu0 %v868
          %1038 = vmatpush.msra.mxu0 %v867
          %1039 = vmatpush.msra.mxu0 %v866
          %1040 = vmatpush.msra.mxu0 %v865
          %1041 = vmatpush.msra.mxu0 %v864
          %1042 = vmatmul.f32.gmra.mxu0 %v754
          %v1043 = vpop.f32.mrf.mxu0
          %v1044 = vadd.f32 %v979, %v1043
          %1045 = vmatmul.f32.gmra.mxu0 %v758
          %v1046 = vpop.f32.mrf.mxu0
          %v1047 = vadd.f32 %v982, %v1046
          %1048 = vmatmul.f32.gmra.mxu0 %v762
          %v1049 = vpop.f32.mrf.mxu0
          %v1050 = vadd.f32 %v985, %v1049
          %1051 = vmatmul.f32.gmra.mxu0 %v766
          %v1052 = vpop.f32.mrf.mxu0
          %v1053 = vadd.f32 %v988, %v1052
          %1054 = vmatmul.f32.gmra.mxu0 %v770
          %v1055 = vpop.f32.mrf.mxu0
          %v1056 = vadd.f32 %v991, %v1055
          %1057 = vmatmul.f32.gmra.mxu0 %v774
          %v1058 = vpop.f32.mrf.mxu0
          %v1059 = vadd.f32 %v994, %v1058
          %1060 = vmatmul.f32.gmra.mxu0 %v778
          %v1061 = vpop.f32.mrf.mxu0
          %v1062 = vadd.f32 %v997, %v1061
          %1063 = vmatmul.f32.gmra.mxu0 %v782
          %v1064 = vpop.f32.mrf.mxu0
          %v1065 = vadd.f32 %v1000, %v1064
          %1066 = vmatmul.f32.gmra.mxu0 %v786
          %v1067 = vpop.f32.mrf.mxu0
          %v1068 = vadd.f32 %v1003, %v1067
          %1069 = vmatmul.f32.gmra.mxu0 %v790
          %v1070 = vpop.f32.mrf.mxu0
          %v1071 = vadd.f32 %v1006, %v1070
          %1072 = vmatmul.f32.gmra.mxu0 %v794
          %v1073 = vpop.f32.mrf.mxu0
          %v1074 = vadd.f32 %v1009, %v1073
          %1075 = vmatmul.f32.gmra.mxu0 %v798
          %v1076 = vpop.f32.mrf.mxu0
          %v1077 = vadd.f32 %v1012, %v1076
          %1078 = vmatmul.f32.gmra.mxu0 %v802
          %v1079 = vpop.f32.mrf.mxu0
          %v1080 = vadd.f32 %v1015, %v1079
          %1081 = vmatmul.f32.gmra.mxu0 %v806
          %v1082 = vpop.f32.mrf.mxu0
          %v1083 = vadd.f32 %v1018, %v1082
          %1084 = vmatmul.f32.gmra.mxu0 %v810
          %v1085 = vpop.f32.mrf.mxu0
          %v1086 = vadd.f32 %v1021, %v1085
          %1087 = vmatmul.f32.gmra.mxu0 %v814
          %v1088 = vpop.f32.mrf.mxu0
          %v1089 = vadd.f32 %v1024, %v1088
          %1090 = vdwg.mxu0
          %1091 = vmatpush.msra.mxu0 %v895
          %1092 = vmatpush.msra.mxu0 %v894
          %1093 = vmatpush.msra.mxu0 %v893
          %1094 = vmatpush.msra.mxu0 %v892
          %1095 = vmatpush.msra.mxu0 %v891
          %1096 = vmatpush.msra.mxu0 %v890
          %1097 = vmatpush.msra.mxu0 %v889
          %1098 = vmatpush.msra.mxu0 %v888
          %1099 = vmatpush.msra.mxu0 %v887
          %1100 = vmatpush.msra.mxu0 %v886
          %1101 = vmatpush.msra.mxu0 %v885
          %1102 = vmatpush.msra.mxu0 %v884
          %1103 = vmatpush.msra.mxu0 %v883
          %1104 = vmatpush.msra.mxu0 %v882
          %1105 = vmatpush.msra.mxu0 %v881
          %1106 = vmatpush.msra.mxu0 %v880
          %1107 = vmatmul.f32.gmra.mxu0 %v755
          %v1108 = vpop.f32.mrf.mxu0
          %v1109 = vadd.f32 %v1044, %v1108
          %1110 = vmatmul.f32.gmra.mxu0 %v759
          %v1111 = vpop.f32.mrf.mxu0
          %v1112 = vadd.f32 %v1047, %v1111
          %1113 = vmatmul.f32.gmra.mxu0 %v763
          %v1114 = vpop.f32.mrf.mxu0
          %v1115 = vadd.f32 %v1050, %v1114
          %1116 = vmatmul.f32.gmra.mxu0 %v767
          %v1117 = vpop.f32.mrf.mxu0
          %v1118 = vadd.f32 %v1053, %v1117
          %1119 = vmatmul.f32.gmra.mxu0 %v771
          %v1120 = vpop.f32.mrf.mxu0
          %v1121 = vadd.f32 %v1056, %v1120
          %1122 = vmatmul.f32.gmra.mxu0 %v775
          %v1123 = vpop.f32.mrf.mxu0
          %v1124 = vadd.f32 %v1059, %v1123
          %1125 = vmatmul.f32.gmra.mxu0 %v779
          %v1126 = vpop.f32.mrf.mxu0
          %v1127 = vadd.f32 %v1062, %v1126
          %1128 = vmatmul.f32.gmra.mxu0 %v783
          %v1129 = vpop.f32.mrf.mxu0
          %v1130 = vadd.f32 %v1065, %v1129
          %1131 = vmatmul.f32.gmra.mxu0 %v787
          %v1132 = vpop.f32.mrf.mxu0
          %v1133 = vadd.f32 %v1068, %v1132
          %1134 = vmatmul.f32.gmra.mxu0 %v791
          %v1135 = vpop.f32.mrf.mxu0
          %v1136 = vadd.f32 %v1071, %v1135
          %1137 = vmatmul.f32.gmra.mxu0 %v795
          %v1138 = vpop.f32.mrf.mxu0
          %v1139 = vadd.f32 %v1074, %v1138
          %1140 = vmatmul.f32.gmra.mxu0 %v799
          %v1141 = vpop.f32.mrf.mxu0
          %v1142 = vadd.f32 %v1077, %v1141
          %1143 = vmatmul.f32.gmra.mxu0 %v803
          %v1144 = vpop.f32.mrf.mxu0
          %v1145 = vadd.f32 %v1080, %v1144
          %1146 = vmatmul.f32.gmra.mxu0 %v807
          %v1147 = vpop.f32.mrf.mxu0
          %v1148 = vadd.f32 %v1083, %v1147
          %1149 = vmatmul.f32.gmra.mxu0 %v811
          %v1150 = vpop.f32.mrf.mxu0
          %v1151 = vadd.f32 %v1086, %v1150
          %1152 = vmatmul.f32.gmra.mxu0 %v815
          %v1153 = vpop.f32.mrf.mxu0
          %v1154 = vadd.f32 %v1089, %v1153
          %1155 = vdwg.mxu0
          %v1156 = vadd.f32 %v816, %v1109
          %v1157 = vadd.f32 %v817, %v1112
          %v1158 = vadd.f32 %v818, %v1115
          %v1159 = vadd.f32 %v819, %v1118
          %v1160 = vadd.f32 %v820, %v1121
          %v1161 = vadd.f32 %v821, %v1124
          %v1162 = vadd.f32 %v822, %v1127
          %v1163 = vadd.f32 %v823, %v1130
          %v1164 = vadd.f32 %v824, %v1133
          %v1165 = vadd.f32 %v825, %v1136
          %v1166 = vadd.f32 %v826, %v1139
          %v1167 = vadd.f32 %v827, %v1142
          %v1168 = vadd.f32 %v828, %v1145
          %v1169 = vadd.f32 %v829, %v1148
          %v1170 = vadd.f32 %v830, %v1151
          %v1171 = vadd.f32 %v831, %v1154
          %vm1172 = vcmask 195584
          %1173 = vst.msk [vmem:[#allocation2] sm:$0xff] %vm1172, %v1156
          %1174 = vst.msk [vmem:[#allocation2 + $0x8] sm:$0xff] %vm1172, %v1157
          %1175 = vst.msk [vmem:[#allocation2 + $0x10] sm:$0xff] %vm1172, %v1158
          %1176 = vst.msk [vmem:[#allocation2 + $0x18] sm:$0xff] %vm1172, %v1159
          %1177 = vst.msk [vmem:[#allocation2 + $0x20] sm:$0xff] %vm1172, %v1160
          %1178 = vst.msk [vmem:[#allocation2 + $0x28] sm:$0xff] %vm1172, %v1161
          %1179 = vst.msk [vmem:[#allocation2 + $0x30] sm:$0xff] %vm1172, %v1162
          %1180 = vst.msk [vmem:[#allocation2 + $0x38] sm:$0xff] %vm1172, %v1163
          %1181 = vst.msk [vmem:[#allocation2 + $0x40] sm:$0xff] %vm1172, %v1164
          %1182 = vst.msk [vmem:[#allocation2 + $0x48] sm:$0xff] %vm1172, %v1165
          %1183 = vst.msk [vmem:[#allocation2 + $0x50] sm:$0xff] %vm1172, %v1166
          %1184 = vst.msk [vmem:[#allocation2 + $0x58] sm:$0xff] %vm1172, %v1167
          %1185 = vst.msk [vmem:[#allocation2 + $0x60] sm:$0xff] %vm1172, %v1168
          %1186 = vst.msk [vmem:[#allocation2 + $0x68] sm:$0xff] %vm1172, %v1169
          %1187 = vst.msk [vmem:[#allocation2 + $0x70] sm:$0xff] %vm1172, %v1170
          %1188 = vst.msk [vmem:[#allocation2 + $0x78] sm:$0xff] %vm1172, %v1171
        $region80: #{tpu_custom_call.1} parent=71 // pred_fallthru
          _
        %p1189 = scmp.eq.s32.totalorder %s47, 2
        // Predicated region
        $region81: #{tpu_custom_call.1} parent=71 // pred_check
          %p1190 = pneg %p1189
        $region82: #{tpu_custom_call.1} parent=71 // pred_check_branch
          %1192 = sbr.rel (%p1190) target = $region84
        $region83: #{tpu_custom_call.1} parent=71 // pred_region
          %v1193 = vld [vmem:[#allocation2] sm:$0xff]
          %v1194 = vld [vmem:[#allocation2 + $0x8] sm:$0xff]
          %v1195 = vld [vmem:[#allocation2 + $0x10] sm:$0xff]
          %v1196 = vld [vmem:[#allocation2 + $0x18] sm:$0xff]
          %v1197 = vld [vmem:[#allocation2 + $0x20] sm:$0xff]
          %v1198 = vld [vmem:[#allocation2 + $0x28] sm:$0xff]
          %v1199 = vld [vmem:[#allocation2 + $0x30] sm:$0xff]
          %v1200 = vld [vmem:[#allocation2 + $0x38] sm:$0xff]
          %v1201 = vld [vmem:[#allocation2 + $0x40] sm:$0xff]
          %v1202 = vld [vmem:[#allocation2 + $0x48] sm:$0xff]
          %v1203 = vld [vmem:[#allocation2 + $0x50] sm:$0xff]
          %v1204 = vld [vmem:[#allocation2 + $0x58] sm:$0xff]
          %v1205 = vld [vmem:[#allocation2 + $0x60] sm:$0xff]
          %v1206 = vld [vmem:[#allocation2 + $0x68] sm:$0xff]
          %v1207 = vld [vmem:[#allocation2 + $0x70] sm:$0xff]
          %v1208 = vld [vmem:[#allocation2 + $0x78] sm:$0xff]
          %v1209 = vld [vmem:[%s619] sm:$0xff]
          %v1210 = vld [vmem:[%s619 + $0x8] sm:$0xff]
          %v1211 = vld [vmem:[%s619 + $0x10] sm:$0xff]
          %v1212 = vld [vmem:[%s619 + $0x18] sm:$0xff]
          %v1213 = vld [vmem:[%s619 + $0x20] sm:$0xff]
          %v1214 = vld [vmem:[%s619 + $0x28] sm:$0xff]
          %v1215 = vld [vmem:[%s619 + $0x30] sm:$0xff]
          %v1216 = vld [vmem:[%s619 + $0x38] sm:$0xff]
          %v1217 = vld [vmem:[%s619 + $0x40] sm:$0xff]
          %v1218 = vld [vmem:[%s619 + $0x48] sm:$0xff]
          %v1219 = vld [vmem:[%s619 + $0x50] sm:$0xff]
          %v1220 = vld [vmem:[%s619 + $0x58] sm:$0xff]
          %v1221 = vld [vmem:[%s619 + $0x60] sm:$0xff]
          %v1222 = vld [vmem:[%s619 + $0x68] sm:$0xff]
          %v1223 = vld [vmem:[%s619 + $0x70] sm:$0xff]
          %v1224 = vld [vmem:[%s619 + $0x78] sm:$0xff]
          %v1225 = vld [vmem:[%s5] sm:$0xff]
          %v1226 = vld [vmem:[%s5 + $0x8] sm:$0xff]
          %v1227 = vld [vmem:[%s5 + $0x10] sm:$0xff]
          %v1228 = vld [vmem:[%s5 + $0x18] sm:$0xff]
          %v1229 = vld [vmem:[%s5 + $0x20] sm:$0xff]
          %v1230 = vld [vmem:[%s5 + $0x28] sm:$0xff]
          %v1231 = vld [vmem:[%s5 + $0x30] sm:$0xff]
          %v1232 = vld [vmem:[%s5 + $0x38] sm:$0xff]
          %v1233 = vld [vmem:[%s5 + $0x40] sm:$0xff]
          %v1234 = vld [vmem:[%s5 + $0x48] sm:$0xff]
          %v1235 = vld [vmem:[%s5 + $0x50] sm:$0xff]
          %v1236 = vld [vmem:[%s5 + $0x58] sm:$0xff]
          %v1237 = vld [vmem:[%s5 + $0x60] sm:$0xff]
          %v1238 = vld [vmem:[%s5 + $0x68] sm:$0xff]
          %v1239 = vld [vmem:[%s5 + $0x70] sm:$0xff]
          %v1240 = vld [vmem:[%s5 + $0x78] sm:$0xff]
          %v1241 = vld [vmem:[%s6] sm:$0xff]
          %v1242 = vld [vmem:[%s6 + $0x8] sm:$0xff]
          %v1243 = vld [vmem:[%s6 + $0x10] sm:$0xff]
          %vm1244 = vcmask 195584
          %v1246 = vsel %vm1244, %v1193, 0
          %v1249 = vsel %vm1244, %v1194, 0
          %v1252 = vsel %vm1244, %v1195, 0
          %v1255 = vsel %vm1244, %v1196, 0
          %v1258 = vsel %vm1244, %v1197, 0
          %v1261 = vsel %vm1244, %v1198, 0
          %v1264 = vsel %vm1244, %v1199, 0
          %v1267 = vsel %vm1244, %v1200, 0
          %v1270 = vsel %vm1244, %v1201, 0
          %v1273 = vsel %vm1244, %v1202, 0
          %v1276 = vsel %vm1244, %v1203, 0
          %v1279 = vsel %vm1244, %v1204, 0
          %v1282 = vsel %vm1244, %v1205, 0
          %v1285 = vsel %vm1244, %v1206, 0
          %v1288 = vsel %vm1244, %v1207, 0
          %v1291 = vsel %vm1244, %v1208, 0
          %1293 = vmatpush.msra.mxu0 0.0
          %1294 = vmatpush.msra.mxu0 0.0
          %1295 = vmatpush.msra.mxu0 0.0
          %1296 = vmatpush.msra.mxu0 0.0
          %1297 = vmatpush.msra.mxu0 0.0
          %1298 = vmatpush.msra.mxu0 0.0
          %1299 = vmatpush.msra.mxu0 0.0
          %1300 = vmatpush.msra.mxu0 0.0
          %1301 = vmatpush.msra.mxu0 0.0
          %1302 = vmatpush.msra.mxu0 0.0
          %1303 = vmatpush.msra.mxu0 0.0
          %1304 = vmatpush.msra.mxu0 0.0
          %1305 = vmatpush.msra.mxu0 0.0
          %1306 = vmatpush.msra.mxu0 %v1243
          %1307 = vmatpush.msra.mxu0 %v1242
          %1308 = vmatpush.msra.mxu0 %v1241
          %1309 = vmatmul.f32.gmra.mxu0 %v1246
          %v1310 = vpop.f32.mrf.mxu0
          %v1311 = vadd.f32 0.0, %v1310
          %1312 = vmatmul.f32.gmra.mxu0 %v1249
          %v1313 = vpop.f32.mrf.mxu0
          %v1314 = vadd.f32 0.0, %v1313
          %1315 = vmatmul.f32.gmra.mxu0 %v1252
          %v1316 = vpop.f32.mrf.mxu0
          %v1317 = vadd.f32 0.0, %v1316
          %1318 = vmatmul.f32.gmra.mxu0 %v1255
          %v1319 = vpop.f32.mrf.mxu0
          %v1320 = vadd.f32 0.0, %v1319
          %1321 = vmatmul.f32.gmra.mxu0 %v1258
          %v1322 = vpop.f32.mrf.mxu0
          %v1323 = vadd.f32 0.0, %v1322
          %1324 = vmatmul.f32.gmra.mxu0 %v1261
          %v1325 = vpop.f32.mrf.mxu0
          %v1326 = vadd.f32 0.0, %v1325
          %1327 = vmatmul.f32.gmra.mxu0 %v1264
          %v1328 = vpop.f32.mrf.mxu0
          %v1329 = vadd.f32 0.0, %v1328
          %1330 = vmatmul.f32.gmra.mxu0 %v1267
          %v1331 = vpop.f32.mrf.mxu0
          %v1332 = vadd.f32 0.0, %v1331
          %1333 = vmatmul.f32.gmra.mxu0 %v1270
          %v1334 = vpop.f32.mrf.mxu0
          %v1335 = vadd.f32 0.0, %v1334
          %1336 = vmatmul.f32.gmra.mxu0 %v1273
          %v1337 = vpop.f32.mrf.mxu0
          %v1338 = vadd.f32 0.0, %v1337
          %1339 = vmatmul.f32.gmra.mxu0 %v1276
          %v1340 = vpop.f32.mrf.mxu0
          %v1341 = vadd.f32 0.0, %v1340
          %1342 = vmatmul.f32.gmra.mxu0 %v1279
          %v1343 = vpop.f32.mrf.mxu0
          %v1344 = vadd.f32 0.0, %v1343
          %1345 = vmatmul.f32.gmra.mxu0 %v1282
          %v1346 = vpop.f32.mrf.mxu0
          %v1347 = vadd.f32 0.0, %v1346
          %1348 = vmatmul.f32.gmra.mxu0 %v1285
          %v1349 = vpop.f32.mrf.mxu0
          %v1350 = vadd.f32 0.0, %v1349
          %1351 = vmatmul.f32.gmra.mxu0 %v1288
          %v1352 = vpop.f32.mrf.mxu0
          %v1353 = vadd.f32 0.0, %v1352
          %1354 = vmatmul.f32.gmra.mxu0 %v1291
          %v1355 = vpop.f32.mrf.mxu0
          %v1356 = vadd.f32 0.0, %v1355
          %1357 = vdwg.mxu0
          %1358 = vmatpush.msra.mxu0 %v1240
          %1359 = vmatpush.msra.mxu0 %v1239
          %1360 = vmatpush.msra.mxu0 %v1238
          %1361 = vmatpush.msra.mxu0 %v1237
          %1362 = vmatpush.msra.mxu0 %v1236
          %1363 = vmatpush.msra.mxu0 %v1235
          %1364 = vmatpush.msra.mxu0 %v1234
          %1365 = vmatpush.msra.mxu0 %v1233
          %1366 = vmatpush.msra.mxu0 %v1232
          %1367 = vmatpush.msra.mxu0 %v1231
          %1368 = vmatpush.msra.mxu0 %v1230
          %1369 = vmatpush.msra.mxu0 %v1229
          %1370 = vmatpush.msra.mxu0 %v1228
          %1371 = vmatpush.msra.mxu0 %v1227
          %1372 = vmatpush.msra.mxu0 %v1226
          %1373 = vmatpush.msra.mxu0 %v1225
          %1374 = vmatmul.f32.gmra.mxu0 %v1209
          %v1375 = vpop.f32.mrf.mxu0
          %v1376 = vadd.f32 %v1311, %v1375
          %1377 = vmatmul.f32.gmra.mxu0 %v1210
          %v1378 = vpop.f32.mrf.mxu0
          %v1379 = vadd.f32 %v1314, %v1378
          %1380 = vmatmul.f32.gmra.mxu0 %v1211
          %v1381 = vpop.f32.mrf.mxu0
          %v1382 = vadd.f32 %v1317, %v1381
          %1383 = vmatmul.f32.gmra.mxu0 %v1212
          %v1384 = vpop.f32.mrf.mxu0
          %v1385 = vadd.f32 %v1320, %v1384
          %1386 = vmatmul.f32.gmra.mxu0 %v1213
          %v1387 = vpop.f32.mrf.mxu0
          %v1388 = vadd.f32 %v1323, %v1387
          %1389 = vmatmul.f32.gmra.mxu0 %v1214
          %v1390 = vpop.f32.mrf.mxu0
          %v1391 = vadd.f32 %v1326, %v1390
          %1392 = vmatmul.f32.gmra.mxu0 %v1215
          %v1393 = vpop.f32.mrf.mxu0
          %v1394 = vadd.f32 %v1329, %v1393
          %1395 = vmatmul.f32.gmra.mxu0 %v1216
          %v1396 = vpop.f32.mrf.mxu0
          %v1397 = vadd.f32 %v1332, %v1396
          %1398 = vmatmul.f32.gmra.mxu0 %v1217
          %v1399 = vpop.f32.mrf.mxu0
          %v1400 = vadd.f32 %v1335, %v1399
          %1401 = vmatmul.f32.gmra.mxu0 %v1218
          %v1402 = vpop.f32.mrf.mxu0
          %v1403 = vadd.f32 %v1338, %v1402
          %1404 = vmatmul.f32.gmra.mxu0 %v1219
          %v1405 = vpop.f32.mrf.mxu0
          %v1406 = vadd.f32 %v1341, %v1405
          %1407 = vmatmul.f32.gmra.mxu0 %v1220
          %v1408 = vpop.f32.mrf.mxu0
          %v1409 = vadd.f32 %v1344, %v1408
          %1410 = vmatmul.f32.gmra.mxu0 %v1221
          %v1411 = vpop.f32.mrf.mxu0
          %v1412 = vadd.f32 %v1347, %v1411
          %1413 = vmatmul.f32.gmra.mxu0 %v1222
          %v1414 = vpop.f32.mrf.mxu0
          %v1415 = vadd.f32 %v1350, %v1414
          %1416 = vmatmul.f32.gmra.mxu0 %v1223
          %v1417 = vpop.f32.mrf.mxu0
          %v1418 = vadd.f32 %v1353, %v1417
          %1419 = vmatmul.f32.gmra.mxu0 %v1224
          %v1420 = vpop.f32.mrf.mxu0
          %v1421 = vadd.f32 %v1356, %v1420
          %1422 = vdwg.mxu0
          %v1423 = vld [vmem:[%s7] sm:$0x1]
          %v1425 = vperm.slane %v1423, 0
          %v1427 = vadd.f32 %v1376, %v1425
          %v1428 = vadd.f32 %v1379, %v1425
          %v1429 = vadd.f32 %v1382, %v1425
          %v1430 = vadd.f32 %v1385, %v1425
          %v1431 = vadd.f32 %v1388, %v1425
          %v1432 = vadd.f32 %v1391, %v1425
          %v1433 = vadd.f32 %v1394, %v1425
          %v1434 = vadd.f32 %v1397, %v1425
          %v1435 = vadd.f32 %v1400, %v1425
          %v1436 = vadd.f32 %v1403, %v1425
          %v1437 = vadd.f32 %v1406, %v1425
          %v1438 = vadd.f32 %v1409, %v1425
          %v1439 = vadd.f32 %v1412, %v1425
          %v1440 = vadd.f32 %v1415, %v1425
          %v1441 = vadd.f32 %v1418, %v1425
          %v1442 = vadd.f32 %v1421, %v1425
          %1443 = vadd.xlane.f32.xlu0 %v1427
          %v1444 = vpop.xlane.xlu0 %1443
          %1445 = vadd.xlane.f32.xlu0 %v1428
          %v1446 = vpop.xlane.xlu0 %1445
          %1447 = vadd.xlane.f32.xlu0 %v1429
          %v1448 = vpop.xlane.xlu0 %1447
          %1449 = vadd.xlane.f32.xlu0 %v1430
          %v1450 = vpop.xlane.xlu0 %1449
          %1451 = vadd.xlane.f32.xlu0 %v1431
          %v1452 = vpop.xlane.xlu0 %1451
          %1453 = vadd.xlane.f32.xlu0 %v1432
          %v1454 = vpop.xlane.xlu0 %1453
          %1455 = vadd.xlane.f32.xlu0 %v1433
          %v1456 = vpop.xlane.xlu0 %1455
          %1457 = vadd.xlane.f32.xlu0 %v1434
          %v1458 = vpop.xlane.xlu0 %1457
          %1459 = vadd.xlane.f32.xlu0 %v1435
          %v1460 = vpop.xlane.xlu0 %1459
          %1461 = vadd.xlane.f32.xlu0 %v1436
          %v1462 = vpop.xlane.xlu0 %1461
          %1463 = vadd.xlane.f32.xlu0 %v1437
          %v1464 = vpop.xlane.xlu0 %1463
          %1465 = vadd.xlane.f32.xlu0 %v1438
          %v1466 = vpop.xlane.xlu0 %1465
          %1467 = vadd.xlane.f32.xlu0 %v1439
          %v1468 = vpop.xlane.xlu0 %1467
          %1469 = vadd.xlane.f32.xlu0 %v1440
          %v1470 = vpop.xlane.xlu0 %1469
          %1471 = vadd.xlane.f32.xlu0 %v1441
          %v1472 = vpop.xlane.xlu0 %1471
          %1473 = vadd.xlane.f32.xlu0 %v1442
          %v1474 = vpop.xlane.xlu0 %1473
          %v1475 = vmul.f32 %v1444, 0.03125
          %v1476 = vmul.f32 %v1446, 0.03125
          %v1477 = vmul.f32 %v1448, 0.03125
          %v1478 = vmul.f32 %v1450, 0.03125
          %v1479 = vmul.f32 %v1452, 0.03125
          %v1480 = vmul.f32 %v1454, 0.03125
          %v1481 = vmul.f32 %v1456, 0.03125
          %v1482 = vmul.f32 %v1458, 0.03125
          %v1483 = vmul.f32 %v1460, 0.03125
          %v1484 = vmul.f32 %v1462, 0.03125
          %v1485 = vmul.f32 %v1464, 0.03125
          %v1486 = vmul.f32 %v1466, 0.03125
          %v1487 = vmul.f32 %v1468, 0.03125
          %v1488 = vmul.f32 %v1470, 0.03125
          %v1489 = vmul.f32 %v1472, 0.03125
          %v1490 = vmul.f32 %v1474, 0.03125
          %v1491 = vmul.f32 %v1427, %v1427
          %v1492 = vmul.f32 %v1428, %v1428
          %v1493 = vmul.f32 %v1429, %v1429
          %v1494 = vmul.f32 %v1430, %v1430
          %v1495 = vmul.f32 %v1431, %v1431
          %v1496 = vmul.f32 %v1432, %v1432
          %v1497 = vmul.f32 %v1433, %v1433
          %v1498 = vmul.f32 %v1434, %v1434
          %v1499 = vmul.f32 %v1435, %v1435
          %v1500 = vmul.f32 %v1436, %v1436
          %v1501 = vmul.f32 %v1437, %v1437
          %v1502 = vmul.f32 %v1438, %v1438
          %v1503 = vmul.f32 %v1439, %v1439
          %v1504 = vmul.f32 %v1440, %v1440
          %v1505 = vmul.f32 %v1441, %v1441
          %v1506 = vmul.f32 %v1442, %v1442
          %1507 = vadd.xlane.f32.xlu0 %v1491
          %v1508 = vpop.xlane.xlu0 %1507
          %1509 = vadd.xlane.f32.xlu0 %v1492
          %v1510 = vpop.xlane.xlu0 %1509
          %1511 = vadd.xlane.f32.xlu0 %v1493
          %v1512 = vpop.xlane.xlu0 %1511
          %1513 = vadd.xlane.f32.xlu0 %v1494
          %v1514 = vpop.xlane.xlu0 %1513
          %1515 = vadd.xlane.f32.xlu0 %v1495
          %v1516 = vpop.xlane.xlu0 %1515
          %1517 = vadd.xlane.f32.xlu0 %v1496
          %v1518 = vpop.xlane.xlu0 %1517
          %1519 = vadd.xlane.f32.xlu0 %v1497
          %v1520 = vpop.xlane.xlu0 %1519
          %1521 = vadd.xlane.f32.xlu0 %v1498
          %v1522 = vpop.xlane.xlu0 %1521
          %1523 = vadd.xlane.f32.xlu0 %v1499
          %v1524 = vpop.xlane.xlu0 %1523
          %1525 = vadd.xlane.f32.xlu0 %v1500
          %v1526 = vpop.xlane.xlu0 %1525
          %1527 = vadd.xlane.f32.xlu0 %v1501
          %v1528 = vpop.xlane.xlu0 %1527
          %1529 = vadd.xlane.f32.xlu0 %v1502
          %v1530 = vpop.xlane.xlu0 %1529
          %1531 = vadd.xlane.f32.xlu0 %v1503
          %v1532 = vpop.xlane.xlu0 %1531
          %1533 = vadd.xlane.f32.xlu0 %v1504
          %v1534 = vpop.xlane.xlu0 %1533
          %1535 = vadd.xlane.f32.xlu0 %v1505
          %v1536 = vpop.xlane.xlu0 %1535
          %1537 = vadd.xlane.f32.xlu0 %v1506
          %v1538 = vpop.xlane.xlu0 %1537
          %v1539 = vmul.f32 %v1508, 0.03125
          %v1540 = vmul.f32 %v1510, 0.03125
          %v1541 = vmul.f32 %v1512, 0.03125
          %v1542 = vmul.f32 %v1514, 0.03125
          %v1543 = vmul.f32 %v1516, 0.03125
          %v1544 = vmul.f32 %v1518, 0.03125
          %v1545 = vmul.f32 %v1520, 0.03125
          %v1546 = vmul.f32 %v1522, 0.03125
          %v1547 = vmul.f32 %v1524, 0.03125
          %v1548 = vmul.f32 %v1526, 0.03125
          %v1549 = vmul.f32 %v1528, 0.03125
          %v1550 = vmul.f32 %v1530, 0.03125
          %v1551 = vmul.f32 %v1532, 0.03125
          %v1552 = vmul.f32 %v1534, 0.03125
          %v1553 = vmul.f32 %v1536, 0.03125
          %v1554 = vmul.f32 %v1538, 0.03125
          %v1555 = vmul.f32 %v1475, %v1475
          %v1556 = vmul.f32 %v1476, %v1476
          %v1557 = vmul.f32 %v1477, %v1477
          %v1558 = vmul.f32 %v1478, %v1478
          %v1559 = vmul.f32 %v1479, %v1479
          %v1560 = vmul.f32 %v1480, %v1480
          %v1561 = vmul.f32 %v1481, %v1481
          %v1562 = vmul.f32 %v1482, %v1482
          %v1563 = vmul.f32 %v1483, %v1483
          %v1564 = vmul.f32 %v1484, %v1484
          %v1565 = vmul.f32 %v1485, %v1485
          %v1566 = vmul.f32 %v1486, %v1486
          %v1567 = vmul.f32 %v1487, %v1487
          %v1568 = vmul.f32 %v1488, %v1488
          %v1569 = vmul.f32 %v1489, %v1489
          %v1570 = vmul.f32 %v1490, %v1490
          %v1571 = vsub.f32 %v1539, %v1555
          %v1572 = vsub.f32 %v1540, %v1556
          %v1573 = vsub.f32 %v1541, %v1557
          %v1574 = vsub.f32 %v1542, %v1558
          %v1575 = vsub.f32 %v1543, %v1559
          %v1576 = vsub.f32 %v1544, %v1560
          %v1577 = vsub.f32 %v1545, %v1561
          %v1578 = vsub.f32 %v1546, %v1562
          %v1579 = vsub.f32 %v1547, %v1563
          %v1580 = vsub.f32 %v1548, %v1564
          %v1581 = vsub.f32 %v1549, %v1565
          %v1582 = vsub.f32 %v1550, %v1566
          %v1583 = vsub.f32 %v1551, %v1567
          %v1584 = vsub.f32 %v1552, %v1568
          %v1585 = vsub.f32 %v1553, %v1569
          %v1586 = vsub.f32 %v1554, %v1570
          %v1587 = vsub.f32 %v1427, %v1475
          %v1588 = vsub.f32 %v1428, %v1476
          %v1589 = vsub.f32 %v1429, %v1477
          %v1590 = vsub.f32 %v1430, %v1478
          %v1591 = vsub.f32 %v1431, %v1479
          %v1592 = vsub.f32 %v1432, %v1480
          %v1593 = vsub.f32 %v1433, %v1481
          %v1594 = vsub.f32 %v1434, %v1482
          %v1595 = vsub.f32 %v1435, %v1483
          %v1596 = vsub.f32 %v1436, %v1484
          %v1597 = vsub.f32 %v1437, %v1485
          %v1598 = vsub.f32 %v1438, %v1486
          %v1599 = vsub.f32 %v1439, %v1487
          %v1600 = vsub.f32 %v1440, %v1488
          %v1601 = vsub.f32 %v1441, %v1489
          %v1602 = vsub.f32 %v1442, %v1490
          %v1603 = vadd.f32 %v1571, 1e-05
          %v1604 = vadd.f32 %v1572, 1e-05
          %v1605 = vadd.f32 %v1573, 1e-05
          %v1606 = vadd.f32 %v1574, 1e-05
          %v1607 = vadd.f32 %v1575, 1e-05
          %v1608 = vadd.f32 %v1576, 1e-05
          %v1609 = vadd.f32 %v1577, 1e-05
          %v1610 = vadd.f32 %v1578, 1e-05
          %v1611 = vadd.f32 %v1579, 1e-05
          %v1612 = vadd.f32 %v1580, 1e-05
          %v1613 = vadd.f32 %v1581, 1e-05
          %v1614 = vadd.f32 %v1582, 1e-05
          %v1615 = vadd.f32 %v1583, 1e-05
          %v1616 = vadd.f32 %v1584, 1e-05
          %v1617 = vadd.f32 %v1585, 1e-05
          %v1618 = vadd.f32 %v1586, 1e-05
          %v1619 = vrsqrt.pop %v1603
          %v1620 = vmul.f32 %v1619, %v1603
          %v1621 = vmul.f32 %v1620, %v1619
          %v1622 = vmul.f32 0.5, %v1621
          %v1623 = vsub.f32 1.5, %v1622
          %v1624 = vmul.f32 %v1619, %v1623
          %vm1625 = vweird.f32 %v1603
          %vm1626 = vweird.f32 %v1619
          %vm1627 = vmor %vm1625, %vm1626
          %v1628 = vsel %vm1627, %v1619, %v1624
          %v1629 = vrsqrt.pop %v1604
          %v1630 = vmul.f32 %v1629, %v1604
          %v1631 = vmul.f32 %v1630, %v1629
          %v1632 = vmul.f32 0.5, %v1631
          %v1633 = vsub.f32 1.5, %v1632
          %v1634 = vmul.f32 %v1629, %v1633
          %vm1635 = vweird.f32 %v1604
          %vm1636 = vweird.f32 %v1629
          %vm1637 = vmor %vm1635, %vm1636
          %v1638 = vsel %vm1637, %v1629, %v1634
          %v1639 = vrsqrt.pop %v1605
          %v1640 = vmul.f32 %v1639, %v1605
          %v1641 = vmul.f32 %v1640, %v1639
          %v1642 = vmul.f32 0.5, %v1641
          %v1643 = vsub.f32 1.5, %v1642
          %v1644 = vmul.f32 %v1639, %v1643
          %vm1645 = vweird.f32 %v1605
          %vm1646 = vweird.f32 %v1639
          %vm1647 = vmor %vm1645, %vm1646
          %v1648 = vsel %vm1647, %v1639, %v1644
          %v1649 = vrsqrt.pop %v1606
          %v1650 = vmul.f32 %v1649, %v1606
          %v1651 = vmul.f32 %v1650, %v1649
          %v1652 = vmul.f32 0.5, %v1651
          %v1653 = vsub.f32 1.5, %v1652
          %v1654 = vmul.f32 %v1649, %v1653
          %vm1655 = vweird.f32 %v1606
          %vm1656 = vweird.f32 %v1649
          %vm1657 = vmor %vm1655, %vm1656
          %v1658 = vsel %vm1657, %v1649, %v1654
          %v1659 = vrsqrt.pop %v1607
          %v1660 = vmul.f32 %v1659, %v1607
          %v1661 = vmul.f32 %v1660, %v1659
          %v1662 = vmul.f32 0.5, %v1661
          %v1663 = vsub.f32 1.5, %v1662
          %v1664 = vmul.f32 %v1659, %v1663
          %vm1665 = vweird.f32 %v1607
          %vm1666 = vweird.f32 %v1659
          %vm1667 = vmor %vm1665, %vm1666
          %v1668 = vsel %vm1667, %v1659, %v1664
          %v1669 = vrsqrt.pop %v1608
          %v1670 = vmul.f32 %v1669, %v1608
          %v1671 = vmul.f32 %v1670, %v1669
          %v1672 = vmul.f32 0.5, %v1671
          %v1673 = vsub.f32 1.5, %v1672
          %v1674 = vmul.f32 %v1669, %v1673
          %vm1675 = vweird.f32 %v1608
          %vm1676 = vweird.f32 %v1669
          %vm1677 = vmor %vm1675, %vm1676
          %v1678 = vsel %vm1677, %v1669, %v1674
          %v1679 = vrsqrt.pop %v1609
          %v1680 = vmul.f32 %v1679, %v1609
          %v1681 = vmul.f32 %v1680, %v1679
          %v1682 = vmul.f32 0.5, %v1681
          %v1683 = vsub.f32 1.5, %v1682
          %v1684 = vmul.f32 %v1679, %v1683
          %vm1685 = vweird.f32 %v1609
          %vm1686 = vweird.f32 %v1679
          %vm1687 = vmor %vm1685, %vm1686
          %v1688 = vsel %vm1687, %v1679, %v1684
          %v1689 = vrsqrt.pop %v1610
          %v1690 = vmul.f32 %v1689, %v1610
          %v1691 = vmul.f32 %v1690, %v1689
          %v1692 = vmul.f32 0.5, %v1691
          %v1693 = vsub.f32 1.5, %v1692
          %v1694 = vmul.f32 %v1689, %v1693
          %vm1695 = vweird.f32 %v1610
          %vm1696 = vweird.f32 %v1689
          %vm1697 = vmor %vm1695, %vm1696
          %v1698 = vsel %vm1697, %v1689, %v1694
          %v1699 = vrsqrt.pop %v1611
          %v1700 = vmul.f32 %v1699, %v1611
          %v1701 = vmul.f32 %v1700, %v1699
          %v1702 = vmul.f32 0.5, %v1701
          %v1703 = vsub.f32 1.5, %v1702
          %v1704 = vmul.f32 %v1699, %v1703
          %vm1705 = vweird.f32 %v1611
          %vm1706 = vweird.f32 %v1699
          %vm1707 = vmor %vm1705, %vm1706
          %v1708 = vsel %vm1707, %v1699, %v1704
          %v1709 = vrsqrt.pop %v1612
          %v1710 = vmul.f32 %v1709, %v1612
          %v1711 = vmul.f32 %v1710, %v1709
          %v1712 = vmul.f32 0.5, %v1711
          %v1713 = vsub.f32 1.5, %v1712
          %v1714 = vmul.f32 %v1709, %v1713
          %vm1715 = vweird.f32 %v1612
          %vm1716 = vweird.f32 %v1709
          %vm1717 = vmor %vm1715, %vm1716
          %v1718 = vsel %vm1717, %v1709, %v1714
          %v1719 = vrsqrt.pop %v1613
          %v1720 = vmul.f32 %v1719, %v1613
          %v1721 = vmul.f32 %v1720, %v1719
          %v1722 = vmul.f32 0.5, %v1721
          %v1723 = vsub.f32 1.5, %v1722
          %v1724 = vmul.f32 %v1719, %v1723
          %vm1725 = vweird.f32 %v1613
          %vm1726 = vweird.f32 %v1719
          %vm1727 = vmor %vm1725, %vm1726
          %v1728 = vsel %vm1727, %v1719, %v1724
          %v1729 = vrsqrt.pop %v1614
          %v1730 = vmul.f32 %v1729, %v1614
          %v1731 = vmul.f32 %v1730, %v1729
          %v1732 = vmul.f32 0.5, %v1731
          %v1733 = vsub.f32 1.5, %v1732
          %v1734 = vmul.f32 %v1729, %v1733
          %vm1735 = vweird.f32 %v1614
          %vm1736 = vweird.f32 %v1729
          %vm1737 = vmor %vm1735, %vm1736
          %v1738 = vsel %vm1737, %v1729, %v1734
          %v1739 = vrsqrt.pop %v1615
          %v1740 = vmul.f32 %v1739, %v1615
          %v1741 = vmul.f32 %v1740, %v1739
          %v1742 = vmul.f32 0.5, %v1741
          %v1743 = vsub.f32 1.5, %v1742
          %v1744 = vmul.f32 %v1739, %v1743
          %vm1745 = vweird.f32 %v1615
          %vm1746 = vweird.f32 %v1739
          %vm1747 = vmor %vm1745, %vm1746
          %v1748 = vsel %vm1747, %v1739, %v1744
          %v1749 = vrsqrt.pop %v1616
          %v1750 = vmul.f32 %v1749, %v1616
          %v1751 = vmul.f32 %v1750, %v1749
          %v1752 = vmul.f32 0.5, %v1751
          %v1753 = vsub.f32 1.5, %v1752
          %v1754 = vmul.f32 %v1749, %v1753
          %vm1755 = vweird.f32 %v1616
          %vm1756 = vweird.f32 %v1749
          %vm1757 = vmor %vm1755, %vm1756
          %v1758 = vsel %vm1757, %v1749, %v1754
          %v1759 = vrsqrt.pop %v1617
          %v1760 = vmul.f32 %v1759, %v1617
          %v1761 = vmul.f32 %v1760, %v1759
          %v1762 = vmul.f32 0.5, %v1761
          %v1763 = vsub.f32 1.5, %v1762
          %v1764 = vmul.f32 %v1759, %v1763
          %vm1765 = vweird.f32 %v1617
          %vm1766 = vweird.f32 %v1759
          %vm1767 = vmor %vm1765, %vm1766
          %v1768 = vsel %vm1767, %v1759, %v1764
          %v1769 = vrsqrt.pop %v1618
          %v1770 = vmul.f32 %v1769, %v1618
          %v1771 = vmul.f32 %v1770, %v1769
          %v1772 = vmul.f32 0.5, %v1771
          %v1773 = vsub.f32 1.5, %v1772
          %v1774 = vmul.f32 %v1769, %v1773
          %vm1775 = vweird.f32 %v1618
          %vm1776 = vweird.f32 %v1769
          %vm1777 = vmor %vm1775, %vm1776
          %v1778 = vsel %vm1777, %v1769, %v1774
          %v1779 = vmul.f32 %v1587, %v1628
          %v1780 = vmul.f32 %v1588, %v1638
          %v1781 = vmul.f32 %v1589, %v1648
          %v1782 = vmul.f32 %v1590, %v1658
          %v1783 = vmul.f32 %v1591, %v1668
          %v1784 = vmul.f32 %v1592, %v1678
          %v1785 = vmul.f32 %v1593, %v1688
          %v1786 = vmul.f32 %v1594, %v1698
          %v1787 = vmul.f32 %v1595, %v1708
          %v1788 = vmul.f32 %v1596, %v1718
          %v1789 = vmul.f32 %v1597, %v1728
          %v1790 = vmul.f32 %v1598, %v1738
          %v1791 = vmul.f32 %v1599, %v1748
          %v1792 = vmul.f32 %v1600, %v1758
          %v1793 = vmul.f32 %v1601, %v1768
          %v1794 = vmul.f32 %v1602, %v1778
          %v1795 = vld [vmem:[%s8] sm:$0x1]
          %v1797 = vperm.slane %v1795, 0
          %v1799 = vmul.f32 %v1779, %v1797
          %v1800 = vmul.f32 %v1780, %v1797
          %v1801 = vmul.f32 %v1781, %v1797
          %v1802 = vmul.f32 %v1782, %v1797
          %v1803 = vmul.f32 %v1783, %v1797
          %v1804 = vmul.f32 %v1784, %v1797
          %v1805 = vmul.f32 %v1785, %v1797
          %v1806 = vmul.f32 %v1786, %v1797
          %v1807 = vmul.f32 %v1787, %v1797
          %v1808 = vmul.f32 %v1788, %v1797
          %v1809 = vmul.f32 %v1789, %v1797
          %v1810 = vmul.f32 %v1790, %v1797
          %v1811 = vmul.f32 %v1791, %v1797
          %v1812 = vmul.f32 %v1792, %v1797
          %v1813 = vmul.f32 %v1793, %v1797
          %v1814 = vmul.f32 %v1794, %v1797
          %v1815 = vld [vmem:[%s9] sm:$0x1]
          %v1817 = vperm.slane %v1815, 0
          %v1819 = vadd.f32 %v1799, %v1817
          %v1820 = vadd.f32 %v1800, %v1817
          %v1821 = vadd.f32 %v1801, %v1817
          %v1822 = vadd.f32 %v1802, %v1817
          %v1823 = vadd.f32 %v1803, %v1817
          %v1824 = vadd.f32 %v1804, %v1817
          %v1825 = vadd.f32 %v1805, %v1817
          %v1826 = vadd.f32 %v1806, %v1817
          %v1827 = vadd.f32 %v1807, %v1817
          %v1828 = vadd.f32 %v1808, %v1817
          %v1829 = vadd.f32 %v1809, %v1817
          %v1830 = vadd.f32 %v1810, %v1817
          %v1831 = vadd.f32 %v1811, %v1817
          %v1832 = vadd.f32 %v1812, %v1817
          %v1833 = vadd.f32 %v1813, %v1817
          %v1834 = vadd.f32 %v1814, %v1817
          %v1835 = vmax.f32 %v1819, 0.0
          %v1836 = vmax.f32 %v1820, 0.0
          %v1837 = vmax.f32 %v1821, 0.0
          %v1838 = vmax.f32 %v1822, 0.0
          %v1839 = vmax.f32 %v1823, 0.0
          %v1840 = vmax.f32 %v1824, 0.0
          %v1841 = vmax.f32 %v1825, 0.0
          %v1842 = vmax.f32 %v1826, 0.0
          %v1843 = vmax.f32 %v1827, 0.0
          %v1844 = vmax.f32 %v1828, 0.0
          %v1845 = vmax.f32 %v1829, 0.0
          %v1846 = vmax.f32 %v1830, 0.0
          %v1847 = vmax.f32 %v1831, 0.0
          %v1848 = vmax.f32 %v1832, 0.0
          %v1849 = vmax.f32 %v1833, 0.0
          %v1850 = vmax.f32 %v1834, 0.0
          %v1851 = vld [vmem:[%s10] sm:$0xff]
          %v1852 = vld [vmem:[%s10 + $0x8] sm:$0xff]
          %v1853 = vld [vmem:[%s10 + $0x10] sm:$0xff]
          %v1854 = vld [vmem:[%s10 + $0x18] sm:$0xff]
          %v1855 = vld [vmem:[%s10 + $0x20] sm:$0xff]
          %v1856 = vld [vmem:[%s10 + $0x28] sm:$0xff]
          %v1857 = vld [vmem:[%s10 + $0x30] sm:$0xff]
          %v1858 = vld [vmem:[%s10 + $0x38] sm:$0xff]
          %v1859 = vld [vmem:[%s10 + $0x40] sm:$0xff]
          %v1860 = vld [vmem:[%s10 + $0x48] sm:$0xff]
          %v1861 = vld [vmem:[%s10 + $0x50] sm:$0xff]
          %v1862 = vld [vmem:[%s10 + $0x58] sm:$0xff]
          %v1863 = vld [vmem:[%s10 + $0x60] sm:$0xff]
          %v1864 = vld [vmem:[%s10 + $0x68] sm:$0xff]
          %v1865 = vld [vmem:[%s10 + $0x70] sm:$0xff]
          %v1866 = vld [vmem:[%s10 + $0x78] sm:$0xff]
          %v1867 = vld [vmem:[%s11] sm:$0xff]
          %v1868 = vld [vmem:[%s11 + $0x8] sm:$0xff]
          %v1869 = vld [vmem:[%s11 + $0x10] sm:$0xff]
          %1870 = vmatpush.msra.mxu0 0.0
          %1871 = vmatpush.msra.mxu0 0.0
          %1872 = vmatpush.msra.mxu0 0.0
          %1873 = vmatpush.msra.mxu0 0.0
          %1874 = vmatpush.msra.mxu0 0.0
          %1875 = vmatpush.msra.mxu0 0.0
          %1876 = vmatpush.msra.mxu0 0.0
          %1877 = vmatpush.msra.mxu0 0.0
          %1878 = vmatpush.msra.mxu0 0.0
          %1879 = vmatpush.msra.mxu0 0.0
          %1880 = vmatpush.msra.mxu0 0.0
          %1881 = vmatpush.msra.mxu0 0.0
          %1882 = vmatpush.msra.mxu0 0.0
          %1883 = vmatpush.msra.mxu0 %v1869
          %1884 = vmatpush.msra.mxu0 %v1868
          %1885 = vmatpush.msra.mxu0 %v1867
          %1886 = vmatmul.f32.gmra.mxu0 %v1246
          %v1887 = vpop.f32.mrf.mxu0
          %v1888 = vadd.f32 0.0, %v1887
          %1889 = vmatmul.f32.gmra.mxu0 %v1249
          %v1890 = vpop.f32.mrf.mxu0
          %v1891 = vadd.f32 0.0, %v1890
          %1892 = vmatmul.f32.gmra.mxu0 %v1252
          %v1893 = vpop.f32.mrf.mxu0
          %v1894 = vadd.f32 0.0, %v1893
          %1895 = vmatmul.f32.gmra.mxu0 %v1255
          %v1896 = vpop.f32.mrf.mxu0
          %v1897 = vadd.f32 0.0, %v1896
          %1898 = vmatmul.f32.gmra.mxu0 %v1258
          %v1899 = vpop.f32.mrf.mxu0
          %v1900 = vadd.f32 0.0, %v1899
          %1901 = vmatmul.f32.gmra.mxu0 %v1261
          %v1902 = vpop.f32.mrf.mxu0
          %v1903 = vadd.f32 0.0, %v1902
          %1904 = vmatmul.f32.gmra.mxu0 %v1264
          %v1905 = vpop.f32.mrf.mxu0
          %v1906 = vadd.f32 0.0, %v1905
          %1907 = vmatmul.f32.gmra.mxu0 %v1267
          %v1908 = vpop.f32.mrf.mxu0
          %v1909 = vadd.f32 0.0, %v1908
          %1910 = vmatmul.f32.gmra.mxu0 %v1270
          %v1911 = vpop.f32.mrf.mxu0
          %v1912 = vadd.f32 0.0, %v1911
          %1913 = vmatmul.f32.gmra.mxu0 %v1273
          %v1914 = vpop.f32.mrf.mxu0
          %v1915 = vadd.f32 0.0, %v1914
          %1916 = vmatmul.f32.gmra.mxu0 %v1276
          %v1917 = vpop.f32.mrf.mxu0
          %v1918 = vadd.f32 0.0, %v1917
          %1919 = vmatmul.f32.gmra.mxu0 %v1279
          %v1920 = vpop.f32.mrf.mxu0
          %v1921 = vadd.f32 0.0, %v1920
          %1922 = vmatmul.f32.gmra.mxu0 %v1282
          %v1923 = vpop.f32.mrf.mxu0
          %v1924 = vadd.f32 0.0, %v1923
          %1925 = vmatmul.f32.gmra.mxu0 %v1285
          %v1926 = vpop.f32.mrf.mxu0
          %v1927 = vadd.f32 0.0, %v1926
          %1928 = vmatmul.f32.gmra.mxu0 %v1288
          %v1929 = vpop.f32.mrf.mxu0
          %v1930 = vadd.f32 0.0, %v1929
          %1931 = vmatmul.f32.gmra.mxu0 %v1291
          %v1932 = vpop.f32.mrf.mxu0
          %v1933 = vadd.f32 0.0, %v1932
          %1934 = vdwg.mxu0
          %1935 = vmatpush.msra.mxu0 %v1866
          %1936 = vmatpush.msra.mxu0 %v1865
          %1937 = vmatpush.msra.mxu0 %v1864
          %1938 = vmatpush.msra.mxu0 %v1863
          %1939 = vmatpush.msra.mxu0 %v1862
          %1940 = vmatpush.msra.mxu0 %v1861
          %1941 = vmatpush.msra.mxu0 %v1860
          %1942 = vmatpush.msra.mxu0 %v1859
          %1943 = vmatpush.msra.mxu0 %v1858
          %1944 = vmatpush.msra.mxu0 %v1857
          %1945 = vmatpush.msra.mxu0 %v1856
          %1946 = vmatpush.msra.mxu0 %v1855
          %1947 = vmatpush.msra.mxu0 %v1854
          %1948 = vmatpush.msra.mxu0 %v1853
          %1949 = vmatpush.msra.mxu0 %v1852
          %1950 = vmatpush.msra.mxu0 %v1851
          %1951 = vmatmul.f32.gmra.mxu0 %v1835
          %v1952 = vpop.f32.mrf.mxu0
          %v1953 = vadd.f32 %v1888, %v1952
          %1954 = vmatmul.f32.gmra.mxu0 %v1836
          %v1955 = vpop.f32.mrf.mxu0
          %v1956 = vadd.f32 %v1891, %v1955
          %1957 = vmatmul.f32.gmra.mxu0 %v1837
          %v1958 = vpop.f32.mrf.mxu0
          %v1959 = vadd.f32 %v1894, %v1958
          %1960 = vmatmul.f32.gmra.mxu0 %v1838
          %v1961 = vpop.f32.mrf.mxu0
          %v1962 = vadd.f32 %v1897, %v1961
          %1963 = vmatmul.f32.gmra.mxu0 %v1839
          %v1964 = vpop.f32.mrf.mxu0
          %v1965 = vadd.f32 %v1900, %v1964
          %1966 = vmatmul.f32.gmra.mxu0 %v1840
          %v1967 = vpop.f32.mrf.mxu0
          %v1968 = vadd.f32 %v1903, %v1967
          %1969 = vmatmul.f32.gmra.mxu0 %v1841
          %v1970 = vpop.f32.mrf.mxu0
          %v1971 = vadd.f32 %v1906, %v1970
          %1972 = vmatmul.f32.gmra.mxu0 %v1842
          %v1973 = vpop.f32.mrf.mxu0
          %v1974 = vadd.f32 %v1909, %v1973
          %1975 = vmatmul.f32.gmra.mxu0 %v1843
          %v1976 = vpop.f32.mrf.mxu0
          %v1977 = vadd.f32 %v1912, %v1976
          %1978 = vmatmul.f32.gmra.mxu0 %v1844
          %v1979 = vpop.f32.mrf.mxu0
          %v1980 = vadd.f32 %v1915, %v1979
          %1981 = vmatmul.f32.gmra.mxu0 %v1845
          %v1982 = vpop.f32.mrf.mxu0
          %v1983 = vadd.f32 %v1918, %v1982
          %1984 = vmatmul.f32.gmra.mxu0 %v1846
          %v1985 = vpop.f32.mrf.mxu0
          %v1986 = vadd.f32 %v1921, %v1985
          %1987 = vmatmul.f32.gmra.mxu0 %v1847
          %v1988 = vpop.f32.mrf.mxu0
          %v1989 = vadd.f32 %v1924, %v1988
          %1990 = vmatmul.f32.gmra.mxu0 %v1848
          %v1991 = vpop.f32.mrf.mxu0
          %v1992 = vadd.f32 %v1927, %v1991
          %1993 = vmatmul.f32.gmra.mxu0 %v1849
          %v1994 = vpop.f32.mrf.mxu0
          %v1995 = vadd.f32 %v1930, %v1994
          %1996 = vmatmul.f32.gmra.mxu0 %v1850
          %v1997 = vpop.f32.mrf.mxu0
          %v1998 = vadd.f32 %v1933, %v1997
          %1999 = vdwg.mxu0
          %v2000 = vld [vmem:[%s12] sm:$0x1]
          %v2002 = vperm.slane %v2000, 0
          %v2004 = vadd.f32 %v1953, %v2002
          %v2005 = vadd.f32 %v1956, %v2002
          %v2006 = vadd.f32 %v1959, %v2002
          %v2007 = vadd.f32 %v1962, %v2002
          %v2008 = vadd.f32 %v1965, %v2002
          %v2009 = vadd.f32 %v1968, %v2002
          %v2010 = vadd.f32 %v1971, %v2002
          %v2011 = vadd.f32 %v1974, %v2002
          %v2012 = vadd.f32 %v1977, %v2002
          %v2013 = vadd.f32 %v1980, %v2002
          %v2014 = vadd.f32 %v1983, %v2002
          %v2015 = vadd.f32 %v1986, %v2002
          %v2016 = vadd.f32 %v1989, %v2002
          %v2017 = vadd.f32 %v1992, %v2002
          %v2018 = vadd.f32 %v1995, %v2002
          %v2019 = vadd.f32 %v1998, %v2002
          %2020 = vadd.xlane.f32.xlu0 %v2004
          %v2021 = vpop.xlane.xlu0 %2020
          %2022 = vadd.xlane.f32.xlu0 %v2005
          %v2023 = vpop.xlane.xlu0 %2022
          %2024 = vadd.xlane.f32.xlu0 %v2006
          %v2025 = vpop.xlane.xlu0 %2024
          %2026 = vadd.xlane.f32.xlu0 %v2007
          %v2027 = vpop.xlane.xlu0 %2026
          %2028 = vadd.xlane.f32.xlu0 %v2008
          %v2029 = vpop.xlane.xlu0 %2028
          %2030 = vadd.xlane.f32.xlu0 %v2009
          %v2031 = vpop.xlane.xlu0 %2030
          %2032 = vadd.xlane.f32.xlu0 %v2010
          %v2033 = vpop.xlane.xlu0 %2032
          %2034 = vadd.xlane.f32.xlu0 %v2011
          %v2035 = vpop.xlane.xlu0 %2034
          %2036 = vadd.xlane.f32.xlu0 %v2012
          %v2037 = vpop.xlane.xlu0 %2036
          %2038 = vadd.xlane.f32.xlu0 %v2013
          %v2039 = vpop.xlane.xlu0 %2038
          %2040 = vadd.xlane.f32.xlu0 %v2014
          %v2041 = vpop.xlane.xlu0 %2040
          %2042 = vadd.xlane.f32.xlu0 %v2015
          %v2043 = vpop.xlane.xlu0 %2042
          %2044 = vadd.xlane.f32.xlu0 %v2016
          %v2045 = vpop.xlane.xlu0 %2044
          %2046 = vadd.xlane.f32.xlu0 %v2017
          %v2047 = vpop.xlane.xlu0 %2046
          %2048 = vadd.xlane.f32.xlu0 %v2018
          %v2049 = vpop.xlane.xlu0 %2048
          %2050 = vadd.xlane.f32.xlu0 %v2019
          %v2051 = vpop.xlane.xlu0 %2050
          %v2052 = vmul.f32 %v2021, 0.03125
          %v2053 = vmul.f32 %v2023, 0.03125
          %v2054 = vmul.f32 %v2025, 0.03125
          %v2055 = vmul.f32 %v2027, 0.03125
          %v2056 = vmul.f32 %v2029, 0.03125
          %v2057 = vmul.f32 %v2031, 0.03125
          %v2058 = vmul.f32 %v2033, 0.03125
          %v2059 = vmul.f32 %v2035, 0.03125
          %v2060 = vmul.f32 %v2037, 0.03125
          %v2061 = vmul.f32 %v2039, 0.03125
          %v2062 = vmul.f32 %v2041, 0.03125
          %v2063 = vmul.f32 %v2043, 0.03125
          %v2064 = vmul.f32 %v2045, 0.03125
          %v2065 = vmul.f32 %v2047, 0.03125
          %v2066 = vmul.f32 %v2049, 0.03125
          %v2067 = vmul.f32 %v2051, 0.03125
          %v2068 = vmul.f32 %v2004, %v2004
          %v2069 = vmul.f32 %v2005, %v2005
          %v2070 = vmul.f32 %v2006, %v2006
          %v2071 = vmul.f32 %v2007, %v2007
          %v2072 = vmul.f32 %v2008, %v2008
          %v2073 = vmul.f32 %v2009, %v2009
          %v2074 = vmul.f32 %v2010, %v2010
          %v2075 = vmul.f32 %v2011, %v2011
          %v2076 = vmul.f32 %v2012, %v2012
          %v2077 = vmul.f32 %v2013, %v2013
          %v2078 = vmul.f32 %v2014, %v2014
          %v2079 = vmul.f32 %v2015, %v2015
          %v2080 = vmul.f32 %v2016, %v2016
          %v2081 = vmul.f32 %v2017, %v2017
          %v2082 = vmul.f32 %v2018, %v2018
          %v2083 = vmul.f32 %v2019, %v2019
          %2084 = vadd.xlane.f32.xlu0 %v2068
          %v2085 = vpop.xlane.xlu0 %2084
          %2086 = vadd.xlane.f32.xlu0 %v2069
          %v2087 = vpop.xlane.xlu0 %2086
          %2088 = vadd.xlane.f32.xlu0 %v2070
          %v2089 = vpop.xlane.xlu0 %2088
          %2090 = vadd.xlane.f32.xlu0 %v2071
          %v2091 = vpop.xlane.xlu0 %2090
          %2092 = vadd.xlane.f32.xlu0 %v2072
          %v2093 = vpop.xlane.xlu0 %2092
          %2094 = vadd.xlane.f32.xlu0 %v2073
          %v2095 = vpop.xlane.xlu0 %2094
          %2096 = vadd.xlane.f32.xlu0 %v2074
          %v2097 = vpop.xlane.xlu0 %2096
          %2098 = vadd.xlane.f32.xlu0 %v2075
          %v2099 = vpop.xlane.xlu0 %2098
          %2100 = vadd.xlane.f32.xlu0 %v2076
          %v2101 = vpop.xlane.xlu0 %2100
          %2102 = vadd.xlane.f32.xlu0 %v2077
          %v2103 = vpop.xlane.xlu0 %2102
          %2104 = vadd.xlane.f32.xlu0 %v2078
          %v2105 = vpop.xlane.xlu0 %2104
          %2106 = vadd.xlane.f32.xlu0 %v2079
          %v2107 = vpop.xlane.xlu0 %2106
          %2108 = vadd.xlane.f32.xlu0 %v2080
          %v2109 = vpop.xlane.xlu0 %2108
          %2110 = vadd.xlane.f32.xlu0 %v2081
          %v2111 = vpop.xlane.xlu0 %2110
          %2112 = vadd.xlane.f32.xlu0 %v2082
          %v2113 = vpop.xlane.xlu0 %2112
          %2114 = vadd.xlane.f32.xlu0 %v2083
          %v2115 = vpop.xlane.xlu0 %2114
          %v2116 = vmul.f32 %v2085, 0.03125
          %v2117 = vmul.f32 %v2087, 0.03125
          %v2118 = vmul.f32 %v2089, 0.03125
          %v2119 = vmul.f32 %v2091, 0.03125
          %v2120 = vmul.f32 %v2093, 0.03125
          %v2121 = vmul.f32 %v2095, 0.03125
          %v2122 = vmul.f32 %v2097, 0.03125
          %v2123 = vmul.f32 %v2099, 0.03125
          %v2124 = vmul.f32 %v2101, 0.03125
          %v2125 = vmul.f32 %v2103, 0.03125
          %v2126 = vmul.f32 %v2105, 0.03125
          %v2127 = vmul.f32 %v2107, 0.03125
          %v2128 = vmul.f32 %v2109, 0.03125
          %v2129 = vmul.f32 %v2111, 0.03125
          %v2130 = vmul.f32 %v2113, 0.03125
          %v2131 = vmul.f32 %v2115, 0.03125
          %v2132 = vmul.f32 %v2052, %v2052
          %v2133 = vmul.f32 %v2053, %v2053
          %v2134 = vmul.f32 %v2054, %v2054
          %v2135 = vmul.f32 %v2055, %v2055
          %v2136 = vmul.f32 %v2056, %v2056
          %v2137 = vmul.f32 %v2057, %v2057
          %v2138 = vmul.f32 %v2058, %v2058
          %v2139 = vmul.f32 %v2059, %v2059
          %v2140 = vmul.f32 %v2060, %v2060
          %v2141 = vmul.f32 %v2061, %v2061
          %v2142 = vmul.f32 %v2062, %v2062
          %v2143 = vmul.f32 %v2063, %v2063
          %v2144 = vmul.f32 %v2064, %v2064
          %v2145 = vmul.f32 %v2065, %v2065
          %v2146 = vmul.f32 %v2066, %v2066
          %v2147 = vmul.f32 %v2067, %v2067
          %v2148 = vsub.f32 %v2116, %v2132
          %v2149 = vsub.f32 %v2117, %v2133
          %v2150 = vsub.f32 %v2118, %v2134
          %v2151 = vsub.f32 %v2119, %v2135
          %v2152 = vsub.f32 %v2120, %v2136
          %v2153 = vsub.f32 %v2121, %v2137
          %v2154 = vsub.f32 %v2122, %v2138
          %v2155 = vsub.f32 %v2123, %v2139
          %v2156 = vsub.f32 %v2124, %v2140
          %v2157 = vsub.f32 %v2125, %v2141
          %v2158 = vsub.f32 %v2126, %v2142
          %v2159 = vsub.f32 %v2127, %v2143
          %v2160 = vsub.f32 %v2128, %v2144
          %v2161 = vsub.f32 %v2129, %v2145
          %v2162 = vsub.f32 %v2130, %v2146
          %v2163 = vsub.f32 %v2131, %v2147
          %v2164 = vsub.f32 %v2004, %v2052
          %v2165 = vsub.f32 %v2005, %v2053
          %v2166 = vsub.f32 %v2006, %v2054
          %v2167 = vsub.f32 %v2007, %v2055
          %v2168 = vsub.f32 %v2008, %v2056
          %v2169 = vsub.f32 %v2009, %v2057
          %v2170 = vsub.f32 %v2010, %v2058
          %v2171 = vsub.f32 %v2011, %v2059
          %v2172 = vsub.f32 %v2012, %v2060
          %v2173 = vsub.f32 %v2013, %v2061
          %v2174 = vsub.f32 %v2014, %v2062
          %v2175 = vsub.f32 %v2015, %v2063
          %v2176 = vsub.f32 %v2016, %v2064
          %v2177 = vsub.f32 %v2017, %v2065
          %v2178 = vsub.f32 %v2018, %v2066
          %v2179 = vsub.f32 %v2019, %v2067
          %v2180 = vadd.f32 %v2148, 1e-05
          %v2181 = vadd.f32 %v2149, 1e-05
          %v2182 = vadd.f32 %v2150, 1e-05
          %v2183 = vadd.f32 %v2151, 1e-05
          %v2184 = vadd.f32 %v2152, 1e-05
          %v2185 = vadd.f32 %v2153, 1e-05
          %v2186 = vadd.f32 %v2154, 1e-05
          %v2187 = vadd.f32 %v2155, 1e-05
          %v2188 = vadd.f32 %v2156, 1e-05
          %v2189 = vadd.f32 %v2157, 1e-05
          %v2190 = vadd.f32 %v2158, 1e-05
          %v2191 = vadd.f32 %v2159, 1e-05
          %v2192 = vadd.f32 %v2160, 1e-05
          %v2193 = vadd.f32 %v2161, 1e-05
          %v2194 = vadd.f32 %v2162, 1e-05
          %v2195 = vadd.f32 %v2163, 1e-05
          %v2196 = vrsqrt.pop %v2180
          %v2197 = vmul.f32 %v2196, %v2180
          %v2198 = vmul.f32 %v2197, %v2196
          %v2199 = vmul.f32 0.5, %v2198
          %v2200 = vsub.f32 1.5, %v2199
          %v2201 = vmul.f32 %v2196, %v2200
          %vm2202 = vweird.f32 %v2180
          %vm2203 = vweird.f32 %v2196
          %vm2204 = vmor %vm2202, %vm2203
          %v2205 = vsel %vm2204, %v2196, %v2201
          %v2206 = vrsqrt.pop %v2181
          %v2207 = vmul.f32 %v2206, %v2181
          %v2208 = vmul.f32 %v2207, %v2206
          %v2209 = vmul.f32 0.5, %v2208
          %v2210 = vsub.f32 1.5, %v2209
          %v2211 = vmul.f32 %v2206, %v2210
          %vm2212 = vweird.f32 %v2181
          %vm2213 = vweird.f32 %v2206
          %vm2214 = vmor %vm2212, %vm2213
          %v2215 = vsel %vm2214, %v2206, %v2211
          %v2216 = vrsqrt.pop %v2182
          %v2217 = vmul.f32 %v2216, %v2182
          %v2218 = vmul.f32 %v2217, %v2216
          %v2219 = vmul.f32 0.5, %v2218
          %v2220 = vsub.f32 1.5, %v2219
          %v2221 = vmul.f32 %v2216, %v2220
          %vm2222 = vweird.f32 %v2182
          %vm2223 = vweird.f32 %v2216
          %vm2224 = vmor %vm2222, %vm2223
          %v2225 = vsel %vm2224, %v2216, %v2221
          %v2226 = vrsqrt.pop %v2183
          %v2227 = vmul.f32 %v2226, %v2183
          %v2228 = vmul.f32 %v2227, %v2226
          %v2229 = vmul.f32 0.5, %v2228
          %v2230 = vsub.f32 1.5, %v2229
          %v2231 = vmul.f32 %v2226, %v2230
          %vm2232 = vweird.f32 %v2183
          %vm2233 = vweird.f32 %v2226
          %vm2234 = vmor %vm2232, %vm2233
          %v2235 = vsel %vm2234, %v2226, %v2231
          %v2236 = vrsqrt.pop %v2184
          %v2237 = vmul.f32 %v2236, %v2184
          %v2238 = vmul.f32 %v2237, %v2236
          %v2239 = vmul.f32 0.5, %v2238
          %v2240 = vsub.f32 1.5, %v2239
          %v2241 = vmul.f32 %v2236, %v2240
          %vm2242 = vweird.f32 %v2184
          %vm2243 = vweird.f32 %v2236
          %vm2244 = vmor %vm2242, %vm2243
          %v2245 = vsel %vm2244, %v2236, %v2241
          %v2246 = vrsqrt.pop %v2185
          %v2247 = vmul.f32 %v2246, %v2185
          %v2248 = vmul.f32 %v2247, %v2246
          %v2249 = vmul.f32 0.5, %v2248
          %v2250 = vsub.f32 1.5, %v2249
          %v2251 = vmul.f32 %v2246, %v2250
          %vm2252 = vweird.f32 %v2185
          %vm2253 = vweird.f32 %v2246
          %vm2254 = vmor %vm2252, %vm2253
          %v2255 = vsel %vm2254, %v2246, %v2251
          %v2256 = vrsqrt.pop %v2186
          %v2257 = vmul.f32 %v2256, %v2186
          %v2258 = vmul.f32 %v2257, %v2256
          %v2259 = vmul.f32 0.5, %v2258
          %v2260 = vsub.f32 1.5, %v2259
          %v2261 = vmul.f32 %v2256, %v2260
          %vm2262 = vweird.f32 %v2186
          %vm2263 = vweird.f32 %v2256
          %vm2264 = vmor %vm2262, %vm2263
          %v2265 = vsel %vm2264, %v2256, %v2261
          %v2266 = vrsqrt.pop %v2187
          %v2267 = vmul.f32 %v2266, %v2187
          %v2268 = vmul.f32 %v2267, %v2266
          %v2269 = vmul.f32 0.5, %v2268
          %v2270 = vsub.f32 1.5, %v2269
          %v2271 = vmul.f32 %v2266, %v2270
          %vm2272 = vweird.f32 %v2187
          %vm2273 = vweird.f32 %v2266
          %vm2274 = vmor %vm2272, %vm2273
          %v2275 = vsel %vm2274, %v2266, %v2271
          %v2276 = vrsqrt.pop %v2188
          %v2277 = vmul.f32 %v2276, %v2188
          %v2278 = vmul.f32 %v2277, %v2276
          %v2279 = vmul.f32 0.5, %v2278
          %v2280 = vsub.f32 1.5, %v2279
          %v2281 = vmul.f32 %v2276, %v2280
          %vm2282 = vweird.f32 %v2188
          %vm2283 = vweird.f32 %v2276
          %vm2284 = vmor %vm2282, %vm2283
          %v2285 = vsel %vm2284, %v2276, %v2281
          %v2286 = vrsqrt.pop %v2189
          %v2287 = vmul.f32 %v2286, %v2189
          %v2288 = vmul.f32 %v2287, %v2286
          %v2289 = vmul.f32 0.5, %v2288
          %v2290 = vsub.f32 1.5, %v2289
          %v2291 = vmul.f32 %v2286, %v2290
          %vm2292 = vweird.f32 %v2189
          %vm2293 = vweird.f32 %v2286
          %vm2294 = vmor %vm2292, %vm2293
          %v2295 = vsel %vm2294, %v2286, %v2291
          %v2296 = vrsqrt.pop %v2190
          %v2297 = vmul.f32 %v2296, %v2190
          %v2298 = vmul.f32 %v2297, %v2296
          %v2299 = vmul.f32 0.5, %v2298
          %v2300 = vsub.f32 1.5, %v2299
          %v2301 = vmul.f32 %v2296, %v2300
          %vm2302 = vweird.f32 %v2190
          %vm2303 = vweird.f32 %v2296
          %vm2304 = vmor %vm2302, %vm2303
          %v2305 = vsel %vm2304, %v2296, %v2301
          %v2306 = vrsqrt.pop %v2191
          %v2307 = vmul.f32 %v2306, %v2191
          %v2308 = vmul.f32 %v2307, %v2306
          %v2309 = vmul.f32 0.5, %v2308
          %v2310 = vsub.f32 1.5, %v2309
          %v2311 = vmul.f32 %v2306, %v2310
          %vm2312 = vweird.f32 %v2191
          %vm2313 = vweird.f32 %v2306
          %vm2314 = vmor %vm2312, %vm2313
          %v2315 = vsel %vm2314, %v2306, %v2311
          %v2316 = vrsqrt.pop %v2192
          %v2317 = vmul.f32 %v2316, %v2192
          %v2318 = vmul.f32 %v2317, %v2316
          %v2319 = vmul.f32 0.5, %v2318
          %v2320 = vsub.f32 1.5, %v2319
          %v2321 = vmul.f32 %v2316, %v2320
          %vm2322 = vweird.f32 %v2192
          %vm2323 = vweird.f32 %v2316
          %vm2324 = vmor %vm2322, %vm2323
          %v2325 = vsel %vm2324, %v2316, %v2321
          %v2326 = vrsqrt.pop %v2193
          %v2327 = vmul.f32 %v2326, %v2193
          %v2328 = vmul.f32 %v2327, %v2326
          %v2329 = vmul.f32 0.5, %v2328
          %v2330 = vsub.f32 1.5, %v2329
          %v2331 = vmul.f32 %v2326, %v2330
          %vm2332 = vweird.f32 %v2193
          %vm2333 = vweird.f32 %v2326
          %vm2334 = vmor %vm2332, %vm2333
          %v2335 = vsel %vm2334, %v2326, %v2331
          %v2336 = vrsqrt.pop %v2194
          %v2337 = vmul.f32 %v2336, %v2194
          %v2338 = vmul.f32 %v2337, %v2336
          %v2339 = vmul.f32 0.5, %v2338
          %v2340 = vsub.f32 1.5, %v2339
          %v2341 = vmul.f32 %v2336, %v2340
          %vm2342 = vweird.f32 %v2194
          %vm2343 = vweird.f32 %v2336
          %vm2344 = vmor %vm2342, %vm2343
          %v2345 = vsel %vm2344, %v2336, %v2341
          %v2346 = vrsqrt.pop %v2195
          %v2347 = vmul.f32 %v2346, %v2195
          %v2348 = vmul.f32 %v2347, %v2346
          %v2349 = vmul.f32 0.5, %v2348
          %v2350 = vsub.f32 1.5, %v2349
          %v2351 = vmul.f32 %v2346, %v2350
          %vm2352 = vweird.f32 %v2195
          %vm2353 = vweird.f32 %v2346
          %vm2354 = vmor %vm2352, %vm2353
          %v2355 = vsel %vm2354, %v2346, %v2351
          %v2356 = vmul.f32 %v2164, %v2205
          %v2357 = vmul.f32 %v2165, %v2215
          %v2358 = vmul.f32 %v2166, %v2225
          %v2359 = vmul.f32 %v2167, %v2235
          %v2360 = vmul.f32 %v2168, %v2245
          %v2361 = vmul.f32 %v2169, %v2255
          %v2362 = vmul.f32 %v2170, %v2265
          %v2363 = vmul.f32 %v2171, %v2275
          %v2364 = vmul.f32 %v2172, %v2285
          %v2365 = vmul.f32 %v2173, %v2295
          %v2366 = vmul.f32 %v2174, %v2305
          %v2367 = vmul.f32 %v2175, %v2315
          %v2368 = vmul.f32 %v2176, %v2325
          %v2369 = vmul.f32 %v2177, %v2335
          %v2370 = vmul.f32 %v2178, %v2345
          %v2371 = vmul.f32 %v2179, %v2355
          %v2372 = vld [vmem:[%s13] sm:$0x1]
          %v2374 = vperm.slane %v2372, 0
          %v2376 = vmul.f32 %v2356, %v2374
          %v2377 = vmul.f32 %v2357, %v2374
          %v2378 = vmul.f32 %v2358, %v2374
          %v2379 = vmul.f32 %v2359, %v2374
          %v2380 = vmul.f32 %v2360, %v2374
          %v2381 = vmul.f32 %v2361, %v2374
          %v2382 = vmul.f32 %v2362, %v2374
          %v2383 = vmul.f32 %v2363, %v2374
          %v2384 = vmul.f32 %v2364, %v2374
          %v2385 = vmul.f32 %v2365, %v2374
          %v2386 = vmul.f32 %v2366, %v2374
          %v2387 = vmul.f32 %v2367, %v2374
          %v2388 = vmul.f32 %v2368, %v2374
          %v2389 = vmul.f32 %v2369, %v2374
          %v2390 = vmul.f32 %v2370, %v2374
          %v2391 = vmul.f32 %v2371, %v2374
          %v2392 = vld [vmem:[%s14] sm:$0x1]
          %v2394 = vperm.slane %v2392, 0
          %v2396 = vadd.f32 %v2376, %v2394
          %v2397 = vadd.f32 %v2377, %v2394
          %v2398 = vadd.f32 %v2378, %v2394
          %v2399 = vadd.f32 %v2379, %v2394
          %v2400 = vadd.f32 %v2380, %v2394
          %v2401 = vadd.f32 %v2381, %v2394
          %v2402 = vadd.f32 %v2382, %v2394
          %v2403 = vadd.f32 %v2383, %v2394
          %v2404 = vadd.f32 %v2384, %v2394
          %v2405 = vadd.f32 %v2385, %v2394
          %v2406 = vadd.f32 %v2386, %v2394
          %v2407 = vadd.f32 %v2387, %v2394
          %v2408 = vadd.f32 %v2388, %v2394
          %v2409 = vadd.f32 %v2389, %v2394
          %v2410 = vadd.f32 %v2390, %v2394
          %v2411 = vadd.f32 %v2391, %v2394
          %v2412 = vmax.f32 %v2396, 0.0
          %v2413 = vmax.f32 %v2397, 0.0
          %v2414 = vmax.f32 %v2398, 0.0
          %v2415 = vmax.f32 %v2399, 0.0
          %v2416 = vmax.f32 %v2400, 0.0
          %v2417 = vmax.f32 %v2401, 0.0
          %v2418 = vmax.f32 %v2402, 0.0
          %v2419 = vmax.f32 %v2403, 0.0
          %v2420 = vmax.f32 %v2404, 0.0
          %v2421 = vmax.f32 %v2405, 0.0
          %v2422 = vmax.f32 %v2406, 0.0
          %v2423 = vmax.f32 %v2407, 0.0
          %v2424 = vmax.f32 %v2408, 0.0
          %v2425 = vmax.f32 %v2409, 0.0
          %v2426 = vmax.f32 %v2410, 0.0
          %v2427 = vmax.f32 %v2411, 0.0
          %2428 = vst [vmem:[%s571] sm:$0xff] %v2412
          %2429 = vst [vmem:[%s571 + $0x8] sm:$0xff] %v2413
          %2430 = vst [vmem:[%s571 + $0x10] sm:$0xff] %v2414
          %2431 = vst [vmem:[%s571 + $0x18] sm:$0xff] %v2415
          %2432 = vst [vmem:[%s571 + $0x20] sm:$0xff] %v2416
          %2433 = vst [vmem:[%s571 + $0x28] sm:$0xff] %v2417
          %2434 = vst [vmem:[%s571 + $0x30] sm:$0xff] %v2418
          %2435 = vst [vmem:[%s571 + $0x38] sm:$0xff] %v2419
          %2436 = vst [vmem:[%s571 + $0x40] sm:$0xff] %v2420
          %2437 = vst [vmem:[%s571 + $0x48] sm:$0xff] %v2421
          %2438 = vst [vmem:[%s571 + $0x50] sm:$0xff] %v2422
          %2439 = vst [vmem:[%s571 + $0x58] sm:$0xff] %v2423
          %2440 = vst [vmem:[%s571 + $0x60] sm:$0xff] %v2424
          %2441 = vst [vmem:[%s571 + $0x68] sm:$0xff] %v2425
          %2442 = vst [vmem:[%s571 + $0x70] sm:$0xff] %v2426
          %2443 = vst [vmem:[%s571 + $0x78] sm:$0xff] %v2427
        $region84: #{tpu_custom_call.1} parent=71 // pred_fallthru
          _
        %s2444 = sand.u32 %s382, 1
        %s2445 = scalar_lea.sflag [#allocation7], %s2444
        %s2446 = sand.u32 %s382, 1
        %s2447 = smul.addr %s2446, 128
        %s2448 = scalar_lea.vmem [#allocation6], %s2447
        // Predicated region
        $region85: #{tpu_custom_call.1} parent=71 // pred_check
          %p2449 = pneg %p392
        $region86: #{tpu_custom_call.1} parent=71 // pred_check_branch
          %2451 = sbr.rel (%p2449) target = $region88
        $region87: #{tpu_custom_call.1} parent=71 // pred_region
          %s2452 = smul.u32 16, %s46
          %2454 = vsyncadd %s2445, 0
          %s2455 = smul.addr %s2452, 8
          %s2456 = scalar_lea.hbm %s15, %s2455
          %s2457 = sshll.u32 %s2448, 4
          %s2458 = int_to_ptr.vmem [resolvable:$true] %s2457
          %s2459 = sshll.u32 %s2456, 4
          %s2460 = int_to_ptr.hbm [resolvable:$true] %s2459
          %2465 = dma.vmem_to_hbm [thread:$0]  %s2458, 2048, %s2460, %s2445, 128, 128, 8
        $region88: #{tpu_custom_call.1} parent=71 // pred_fallthru
          _
      $region72: #{tpu_custom_call.1} parent=5 // pred_fallthru
        _
      %p2466 = scmp.le.s32.totalorder 2, %s37
      // Predicated region
      $region89: #{tpu_custom_call.1} parent=5 // pred_check
        %p2467 = pneg %p2466
      $region90: #{tpu_custom_call.1} parent=5 // pred_check_branch
        %2469 = sbr.rel (%p2467) target = $region92
      $region91: #{tpu_custom_call.1} parent=5 // pred_region
        %s2470 = ssub.s32 %s37, 2
        // Predicated region
        $region93: #{tpu_custom_call.1} parent=91 // pred_check
          %p2471 = pneg %p398
        $region94: #{tpu_custom_call.1} parent=91 // pred_check_branch
          %2473 = sbr.rel (%p2471) target = $region96
        $region95: #{tpu_custom_call.1} parent=91 // pred_region
          %s2474 = sand.u32 %s383, 1
          %s2475 = scalar_lea.sflag [#allocation7], %s2474
          %s2476 = sand.u32 %s383, 1
          %s2477 = smul.addr %s2476, 128
          %s2478 = scalar_lea.vmem [#allocation6], %s2477
          %2480 = dma.done %s2475, 2048
        $region96: #{tpu_custom_call.1} parent=91 // pred_fallthru
          _
      $region92: #{tpu_custom_call.1} parent=5 // pred_fallthru
        _
    $region6: #{tpu_custom_call.1} parent=1 // loop_footer
      %s41 = sadd.s32 1, %s37
    $region7: #{tpu_custom_call.1} parent=1 // loop_footer_branch
      %36 = sbr.rel target = $region3
    $region8: #{tpu_custom_call.1} parent=1 // loop_exit
      _
    %2481 = vsyncpa [#allocation7], 1
    %s2482 = scalar_lea.sflag [#allocation7], 1
    %2483 = vsyncpa %s2482, 1

</llo_original>
